<compile_context>
chip_gen: v6e
topology: v6e:2x2x1
jax: 0.10.0
libtpu: 0.0.40
codegen_flags: <defaults>
</compile_context>

<pallas_src>
import jax
import jax.numpy as jnp
from jax import lax
from jax.experimental import pallas as pl
from jax.experimental.pallas import tpu as pltpu

BN_EPS = 1e-5
NEG_SLOPE = 0.2
SUBLANE = 8
MAX_TILE_M = 1024


def _round_up(x, m):
    return (x + m - 1) // m * m


def _pick_tile_m(M, K, C, budget_bytes=8 << 20):
    """Largest M tile (multiple of 8) whose double-buffered working set fits."""
    tile = MAX_TILE_M
    # bf16 patches + bf16 y + f32 out tiles, x2 for double buffering.
    while tile > 128 and 2 * tile * (2 * K + 2 * C + 4 * C) > budget_bytes:
        tile //= 2
    tile = min(tile, _round_up(M, SUBLANE))
    return max(SUBLANE, _round_up(tile, SUBLANE))


# ---------- Pass 1: conv-as-matmul + per-channel sum / sum-of-squares --------
def conv_stats_kernel(p_ref, w_ref, y_ref, stats_ref):
    # p: (tile_m, K) bf16, w: (K, Cout) bf16
    # y: (tile_m, Cout) bf16, stats: (8, Cout) f32 (row0 = sum, row1 = sumsq)
    i = pl.program_id(0)
    acc = jnp.dot(p_ref[...], w_ref[...], preferred_element_type=jnp.float32)
    y_ref[...] = acc.astype(y_ref.dtype)

    @pl.when(i == 0)
    def _():
        stats_ref[...] = jnp.zeros_like(stats_ref)

    # Stats come from the f32 accumulator (full precision), not the bf16 y.
    stats_ref[0:1, :] += jnp.sum(acc, axis=0, keepdims=True)
    stats_ref[1:2, :] += jnp.sum(acc * acc, axis=0, keepdims=True)


# ---------- Pass 2: folded BN affine (precomputed) + LeakyReLU ----------------
def bn_lrelu_kernel(y_ref, scale_ref, shift_ref, out_ref):
    z = y_ref[...].astype(jnp.float32) * scale_ref[...] + shift_ref[...]
    out_ref[...] = jnp.where(z >= 0, z, NEG_SLOPE * z)


def _im2col(x_nchw, kh, kw, pad):
    # (N, Cin, H, W) -> (N*H*W, Cin*kh*kw), stride 1, 'same' padding.
    N, Cin, H, W = x_nchw.shape
    xp = jnp.pad(x_nchw, ((0, 0), (0, 0), (pad, pad), (pad, pad)))
    cols = [xp[:, :, i:i + H, j:j + W] for i in range(kh) for j in range(kw)]
    p = jnp.stack(cols, axis=2)                        # (N, Cin, kh*kw, H, W)
    p = p.reshape(N, Cin * kh * kw, H, W)              # matches torch weight order
    return p.transpose(0, 2, 3, 1).reshape(N * H * W, Cin * kh * kw)


@jax.jit
def conv_block(x_nchw, weight, bias, gamma, beta):
    """x: (N, Cin, H, W); weight: (Cout, Cin, kh, kw); bias/gamma/beta: (Cout,)
       returns (N, Cout, H, W). Conv stride=1/'same', BN train-mode, LeakyReLU 0.2."""
    del bias  # exactly cancelled by train-mode BN mean subtraction (dead work)
    N, Cin, H, W = x_nchw.shape
    Cout, _, kh, kw = weight.shape
    pad = kh // 2

    M = N * H * W
    K = Cin * kh * kw
    tile_m = _pick_tile_m(M, K, Cout)
    M_pad = _round_up(M, tile_m)
    grid_m = M_pad // tile_m

    # im2col glue in bf16 (half-width XLA intermediates); no K/Cout padding.
    # TODO(synk): replace im2col with in-kernel shifted matmuls over NHWC.
    patches = _im2col(x_nchw.astype(jnp.bfloat16), kh, kw, pad)       # (M, K)
    patches = jnp.pad(patches, ((0, M_pad - M), (0, 0)))
    w2d = weight.reshape(Cout, K).T.astype(jnp.bfloat16)              # (K, Cout)

    # Pass 1: tiled matmul + resident per-channel sum / sumsq accumulator.
    y_bf16, stats = pl.pallas_call(
        conv_stats_kernel,
        grid=(grid_m,),
        out_shape=(jax.ShapeDtypeStruct((M_pad, Cout), jnp.bfloat16),
                   jax.ShapeDtypeStruct((8, Cout), jnp.float32)),
        in_specs=[pl.BlockSpec((tile_m, K), lambda i: (i, 0)),
                  pl.BlockSpec((K, Cout), lambda i: (0, 0))],
        out_specs=(pl.BlockSpec((tile_m, Cout), lambda i: (i, 0)),
                   pl.BlockSpec((8, Cout), lambda i: (0, 0))),
        compiler_params=pltpu.CompilerParams(
            dimension_semantics=("arbitrary",)),   # stats accumulate across M
    )(patches, w2d)

    # BN fold hoisted to XLA: tiny (Cout,)-sized op, done once.
    inv_m = 1.0 / float(M)            # padded rows are zero and excluded here
    mean = stats[0] * inv_m
    var = jnp.maximum(stats[1] * inv_m - mean * mean, 0.0)   # clamp cancellation
    scale = gamma.astype(jnp.float32) * lax.rsqrt(var + BN_EPS)
    shift = beta.astype(jnp.float32) - scale * mean
    scale2d = scale.reshape(1, Cout)
    shift2d = shift.reshape(1, Cout)

    # Pass 2: stream bf16 y, one FMA + LeakyReLU, f32 output.
    out_pad = pl.pallas_call(
        bn_lrelu_kernel,
        grid=(grid_m,),
        out_shape=jax.ShapeDtypeStruct((M_pad, Cout), jnp.float32),
        in_specs=[pl.BlockSpec((tile_m, Cout), lambda i: (i, 0)),
                  pl.BlockSpec((1, Cout), lambda i: (0, 0)),
                  pl.BlockSpec((1, Cout), lambda i: (0, 0))],
        out_specs=pl.BlockSpec((tile_m, Cout), lambda i: (i, 0)),
        compiler_params=pltpu.CompilerParams(
            dimension_semantics=("parallel",)),    # megacore-able on v7x
    )(y_bf16, scale2d, shift2d)

    # Strip padding, back to NCHW (PyTorch interface).
    # TODO(synk): skip this transpose when the consumer accepts NHWC.
    return out_pad[:M].reshape(N, H, W, Cout).transpose(0, 3, 1, 2)


def conv_block_ref(x_nchw, weight, bias, gamma, beta):
    """Pure-JAX reference (bf16 conv inputs / f32 accumulate, like the kernel)."""
    pad = weight.shape[2] // 2
    y = lax.conv_general_dilated(
        x_nchw.astype(jnp.bfloat16), weight.astype(jnp.bfloat16),
        window_strides=(1, 1), padding=((pad, pad), (pad, pad)),
        dimension_numbers=("NCHW", "OIHW", "NCHW"),
        preferred_element_type=jnp.float32)
    y = y + bias.reshape(1, -1, 1, 1)   # mathematically cancelled by BN below
    mean = jnp.mean(y, axis=(0, 2, 3), keepdims=True)
    var = jnp.mean((y - mean) ** 2, axis=(0, 2, 3), keepdims=True)
    z = gamma.reshape(1, -1, 1, 1) * (y - mean) * lax.rsqrt(var + BN_EPS) \
        + beta.reshape(1, -1, 1, 1)
    return jnp.where(z >= 0, z, NEG_SLOPE * z)


if __name__ == "__main__":
    # ConvBlock(in_channels=4, out_channels=8, kernel_size=3, stride=1, padding=1)
    N, Cin, H, W = 2, 4, 16, 16
    Cout, kh, kw = 8, 3, 3

    key = jax.random.PRNGKey(0)
    kx, kw_, kb, kg, kbe = jax.random.split(key, 5)
    x = jax.random.normal(kx, (N, Cin, H, W), dtype=jnp.float32)
    weight = 0.1 * jax.random.normal(kw_, (Cout, Cin, kh, kw), dtype=jnp.float32)
    bias = 0.1 * jax.random.normal(kb, (Cout,), dtype=jnp.float32)
    gamma = 1.0 + 0.05 * jax.random.normal(kg, (Cout,), dtype=jnp.float32)
    beta = 0.05 * jax.random.normal(kbe, (Cout,), dtype=jnp.float32)

    out = jax.block_until_ready(conv_block(x, weight, bias, gamma, beta))
    ref = jax.block_until_ready(conv_block_ref(x, weight, bias, gamma, beta))

    assert out.shape == (N, Cout, H, W)
    max_err = jnp.max(jnp.abs(out - ref))
    # bf16 intermediate y => ~2^-9 relative quantization on the conv output.
    assert jnp.allclose(out, ref, atol=5e-3, rtol=5e-3), f"max abs err {max_err}"

    print("KERNEL_OK")
</pallas_src>

<mosaic_0001>
module attributes {stable_mosaic.version = 11 : i64} {
  func.func @conv_stats_kernel(%arg0: i32, %arg1: memref<512x36xbf16, #tpu.memory_space<vmem>>, %arg2: memref<36x8xbf16, #tpu.memory_space<vmem>>, %arg3: memref<512x8xbf16, #tpu.memory_space<vmem>>, %arg4: memref<8x8xf32, #tpu.memory_space<vmem>>) attributes {dimension_semantics = [#tpu.dimension_semantics<arbitrary>], iteration_bounds = array<i64: 1>, scalar_prefetch = 0 : i64, scratch_operands = 0 : i64, tpu.core_type = #tpu.core_type<tc>, window_params = [{transform_indices = @transform_0, window_bounds = array<i64: 512, 36>}, {pipeline_mode = #tpu.pipeline_mode<synchronous>, transform_indices = @transform_1, window_bounds = array<i64: 36, 8>}, {transform_indices = @transform_2, window_bounds = array<i64: 512, 8>}, {pipeline_mode = #tpu.pipeline_mode<synchronous>, transform_indices = @transform_3, window_bounds = array<i64: 8, 8>}]} {
    %c0 = arith.constant 0 : index
    %c0_0 = arith.constant 0 : index
    %0 = vector.load %arg1[%c0, %c0_0] : memref<512x36xbf16, #tpu.memory_space<vmem>>, vector<512x36xbf16>
    %c0_1 = arith.constant 0 : index
    %c0_2 = arith.constant 0 : index
    %1 = vector.load %arg2[%c0_1, %c0_2] : memref<36x8xbf16, #tpu.memory_space<vmem>>, vector<36x8xbf16>
    %cst = arith.constant dense<0.000000e+00> : vector<512x8xf32>
    %2 = tpu.matmul %0, %1, %cst {dimension_numbers = #tpu.dot_dimension_numbers<[1], [0], [0], [1], [0, 0, 1, 1], [], []>} : vector<512x36xbf16>, vector<36x8xbf16>, vector<512x8xf32> -> vector<512x8xf32>
    %3 = arith.truncf %2 : vector<512x8xf32> to vector<512x8xbf16>
    %c0_3 = arith.constant 0 : index
    %c0_4 = arith.constant 0 : index
    %4 = vector.load %arg3[%c0_3, %c0_4] : memref<512x8xbf16, #tpu.memory_space<vmem>>, vector<512x8xbf16>
    tpu.vector_store %arg3[%c0_3, %c0_4], %3 {strides = array<i32>} : memref<512x8xbf16, #tpu.memory_space<vmem>>, vector<512x8xbf16>,
    %c0_i32 = arith.constant 0 : i32
    %5 = arith.cmpi eq, %arg0, %c0_i32 : i32
    %6 = arith.extui %5 : i1 to i32
    %c0_i32_5 = arith.constant 0 : i32
    %7 = arith.cmpi ne, %6, %c0_i32_5 : i32
    scf.if %7 {
      %cst_15 = arith.constant 0.000000e+00 : f32
      %19 = vector.broadcast %cst_15 : f32 to vector<8x8xf32>
      %c0_16 = arith.constant 0 : index
      %c0_17 = arith.constant 0 : index
      %20 = vector.load %arg4[%c0_16, %c0_17] : memref<8x8xf32, #tpu.memory_space<vmem>>, vector<8x8xf32>
      tpu.vector_store %arg4[%c0_16, %c0_17], %19 {strides = array<i32>} : memref<8x8xf32, #tpu.memory_space<vmem>>, vector<8x8xf32>,
    } else {
    }
    %c0_6 = arith.constant 0 : index
    %c0_7 = arith.constant 0 : index
    %8 = vector.load %arg4[%c0_6, %c0_7] : memref<8x8xf32, #tpu.memory_space<vmem>>, vector<1x8xf32>
    %cst_8 = arith.constant dense<0.000000e+00> : vector<8xf32>
    %9 = vector.multi_reduction <add>, %2, %cst_8 [0] : vector<512x8xf32> to vector<8xf32>
    %10 = vector.shape_cast %9 : vector<8xf32> to vector<1x8xf32>
    %11 = arith.addf %8, %10 : vector<1x8xf32>
    %c0_9 = arith.constant 0 : index
    %c0_10 = arith.constant 0 : index
    %12 = vector.load %arg4[%c0_9, %c0_10] : memref<8x8xf32, #tpu.memory_space<vmem>>, vector<1x8xf32>
    tpu.vector_store %arg4[%c0_9, %c0_10], %11 {strides = array<i32>} : memref<8x8xf32, #tpu.memory_space<vmem>>, vector<1x8xf32>,
    %c1 = arith.constant 1 : index
    %c0_11 = arith.constant 0 : index
    %13 = vector.load %arg4[%c1, %c0_11] : memref<8x8xf32, #tpu.memory_space<vmem>>, vector<1x8xf32>
    %14 = arith.mulf %2, %2 : vector<512x8xf32>
    %cst_12 = arith.constant dense<0.000000e+00> : vector<8xf32>
    %15 = vector.multi_reduction <add>, %14, %cst_12 [0] : vector<512x8xf32> to vector<8xf32>
    %16 = vector.shape_cast %15 : vector<8xf32> to vector<1x8xf32>
    %17 = arith.addf %13, %16 : vector<1x8xf32>
    %c1_13 = arith.constant 1 : index
    %c0_14 = arith.constant 0 : index
    %18 = vector.load %arg4[%c1_13, %c0_14] : memref<8x8xf32, #tpu.memory_space<vmem>>, vector<1x8xf32>
    tpu.vector_store %arg4[%c1_13, %c0_14], %17 {strides = array<i32>} : memref<8x8xf32, #tpu.memory_space<vmem>>, vector<1x8xf32>,
    return
  }
  func.func @transform_0(%arg0: i32) -> (i32, i32) {
    %c0_i32 = arith.constant 0 : i32
    %c0_i32_0 = arith.constant 0 : i32
    return %arg0, %c0_i32 : i32, i32
  }
  func.func @transform_1(%arg0: i32) -> (i32, i32) {
    %c0_i32 = arith.constant 0 : i32
    %c0_i32_0 = arith.constant 0 : i32
    %c0_i32_1 = arith.constant 0 : i32
    return %c0_i32, %c0_i32_0 : i32, i32
  }
  func.func @transform_2(%arg0: i32) -> (i32, i32) {
    %c0_i32 = arith.constant 0 : i32
    %c0_i32_0 = arith.constant 0 : i32
    return %arg0, %c0_i32 : i32, i32
  }
  func.func @transform_3(%arg0: i32) -> (i32, i32) {
    %c0_i32 = arith.constant 0 : i32
    %c0_i32_0 = arith.constant 0 : i32
    %c0_i32_1 = arith.constant 0 : i32
    return %c0_i32, %c0_i32_0 : i32, i32
  }
}

module attributes {stable_mosaic.version = 11 : i64} {
  func.func @bn_lrelu_kernel(%arg0: i32, %arg1: memref<512x8xbf16, #tpu.memory_space<vmem>>, %arg2: memref<1x8xf32, #tpu.memory_space<vmem>>, %arg3: memref<1x8xf32, #tpu.memory_space<vmem>>, %arg4: memref<512x8xf32, #tpu.memory_space<vmem>>) attributes {dimension_semantics = [#tpu.dimension_semantics<parallel>], iteration_bounds = array<i64: 1>, scalar_prefetch = 0 : i64, scratch_operands = 0 : i64, tpu.core_type = #tpu.core_type<tc>, window_params = [{transform_indices = @transform_0, window_bounds = array<i64: 512, 8>}, {pipeline_mode = #tpu.pipeline_mode<synchronous>, transform_indices = @transform_1, window_bounds = array<i64: 1, 8>}, {pipeline_mode = #tpu.pipeline_mode<synchronous>, transform_indices = @transform_2, window_bounds = array<i64: 1, 8>}, {transform_indices = @transform_3, window_bounds = array<i64: 512, 8>}]} {
    %c0 = arith.constant 0 : index
    %c0_0 = arith.constant 0 : index
    %0 = vector.load %arg1[%c0, %c0_0] : memref<512x8xbf16, #tpu.memory_space<vmem>>, vector<512x8xbf16>
    %1 = arith.extf %0 : vector<512x8xbf16> to vector<512x8xf32>
    %c0_1 = arith.constant 0 : index
    %c0_2 = arith.constant 0 : index
    %2 = vector.load %arg2[%c0_1, %c0_2] : memref<1x8xf32, #tpu.memory_space<vmem>>, vector<1x8xf32>
    %3 = vector.broadcast %2 : vector<1x8xf32> to vector<512x8xf32>
    %4 = arith.mulf %1, %3 : vector<512x8xf32>
    %c0_3 = arith.constant 0 : index
    %c0_4 = arith.constant 0 : index
    %5 = vector.load %arg3[%c0_3, %c0_4] : memref<1x8xf32, #tpu.memory_space<vmem>>, vector<1x8xf32>
    %6 = vector.broadcast %5 : vector<1x8xf32> to vector<512x8xf32>
    %7 = arith.addf %4, %6 : vector<512x8xf32>
    %cst = arith.constant 0.000000e+00 : f32
    %8 = vector.broadcast %cst : f32 to vector<512x8xf32>
    %9 = arith.cmpf oge, %7, %8 : vector<512x8xf32>
    %cst_5 = arith.constant 2.000000e-01 : f32
    %10 = vector.broadcast %cst_5 : f32 to vector<512x8xf32>
    %11 = arith.mulf %10, %7 : vector<512x8xf32>
    %12 = arith.select %9, %7, %11 : vector<512x8xi1>, vector<512x8xf32>
    %c0_6 = arith.constant 0 : index
    %c0_7 = arith.constant 0 : index
    %13 = vector.load %arg4[%c0_6, %c0_7] : memref<512x8xf32, #tpu.memory_space<vmem>>, vector<512x8xf32>
    tpu.vector_store %arg4[%c0_6, %c0_7], %12 {strides = array<i32>} : memref<512x8xf32, #tpu.memory_space<vmem>>, vector<512x8xf32>,
    return
  }
  func.func @transform_0(%arg0: i32) -> (i32, i32) {
    %c0_i32 = arith.constant 0 : i32
    %c0_i32_0 = arith.constant 0 : i32
    return %arg0, %c0_i32 : i32, i32
  }
  func.func @transform_1(%arg0: i32) -> (i32, i32) {
    %c0_i32 = arith.constant 0 : i32
    %c0_i32_0 = arith.constant 0 : i32
    %c0_i32_1 = arith.constant 0 : i32
    return %c0_i32, %c0_i32_0 : i32, i32
  }
  func.func @transform_2(%arg0: i32) -> (i32, i32) {
    %c0_i32 = arith.constant 0 : i32
    %c0_i32_0 = arith.constant 0 : i32
    %c0_i32_1 = arith.constant 0 : i32
    return %c0_i32, %c0_i32_0 : i32, i32
  }
  func.func @transform_3(%arg0: i32) -> (i32, i32) {
    %c0_i32 = arith.constant 0 : i32
    %c0_i32_0 = arith.constant 0 : i32
    return %arg0, %c0_i32 : i32, i32
  }
}

</mosaic_0001>

<llo_original>
// kernel: conv_block.3
$region0: #{conv_block.3}
  #allocation0 [shape = 'u32[]', space=smem, size = 0x4, offset = 0x4, fixed_abs, tag = 'smem constant byte address 0x4 - core index']
  #allocation1 [shape = 'u32[144,128]{1,0:T(1,128)}', space=vmem, size = 0x12000, scoped, tag = 'internal scratch']
  %s0 = inlined_call_operand.vmem [shape: bf16[512,8], index: 0, kind: input, shape index: {}]
  %s1 = inlined_call_operand.vmem [shape: f32[1,8], index: 1, kind: input, shape index: {}]
  %s2 = inlined_call_operand.vmem [shape: f32[1,8], index: 2, kind: input, shape index: {}]
  %s3 = inlined_call_operand.vmem [shape: f32[512,8], index: 3, kind: output, shape index: {}]
  %s4 = sld [smem:[#allocation0]]
  $region22: #{conv_block.3} parent=0
    _
  %s6 = ssub.s32 1, %s4
  %s7 = scalar_select 0, %s6, %s4
  // Predicated region
  $region2: #{conv_block.3} parent=0 // pred_check
    _
  $region3: #{conv_block.3} parent=0 // pred_check_branch
    %9 = sbr.rel (0) target = $region5
  $region4: #{conv_block.3} parent=0 // pred_region
    _
  $region5: #{conv_block.3} parent=0 // pred_fallthru
    _
  // Predicated region
  $region6: #{conv_block.3} parent=0 // pred_check
    _
  $region7: #{conv_block.3} parent=0 // pred_check_branch
    %11 = sbr.rel (0) target = $region9
  $region8: #{conv_block.3} parent=0 // pred_region
    _
  $region9: #{conv_block.3} parent=0 // pred_fallthru
    _
  // Predicated region
  $region10: #{conv_block.3} parent=0 // pred_check
    _
  $region11: #{conv_block.3} parent=0 // pred_check_branch
    %13 = sbr.rel (0) target = $region13
  $region12: #{conv_block.3} parent=0 // pred_region
    _
  $region13: #{conv_block.3} parent=0 // pred_fallthru
    _
  %v14 = vld [vmem:[%s0] sm:$0xf]
  %v15 = vld [vmem:[%s0 + $0x4] sm:$0xf]
  %v16 = vld [vmem:[%s0 + $0x8] sm:$0xf]
  %v17 = vld [vmem:[%s0 + $0xc] sm:$0xf]
  %v18 = vld [vmem:[%s0 + $0x10] sm:$0xf]
  %v19 = vld [vmem:[%s0 + $0x14] sm:$0xf]
  %v20 = vld [vmem:[%s0 + $0x18] sm:$0xf]
  %v21 = vld [vmem:[%s0 + $0x1c] sm:$0xf]
  %v22 = vld [vmem:[%s0 + $0x20] sm:$0xf]
  %v23 = vld [vmem:[%s0 + $0x24] sm:$0xf]
  %v24 = vld [vmem:[%s0 + $0x28] sm:$0xf]
  %v25 = vld [vmem:[%s0 + $0x2c] sm:$0xf]
  %v26 = vld [vmem:[%s0 + $0x30] sm:$0xf]
  %v27 = vld [vmem:[%s0 + $0x34] sm:$0xf]
  %v28 = vld [vmem:[%s0 + $0x38] sm:$0xf]
  %v29 = vld [vmem:[%s0 + $0x3c] sm:$0xf]
  %v30 = vld [vmem:[%s0 + $0x40] sm:$0xf]
  %v31 = vld [vmem:[%s0 + $0x44] sm:$0xf]
  %v32 = vld [vmem:[%s0 + $0x48] sm:$0xf]
  %v33 = vld [vmem:[%s0 + $0x4c] sm:$0xf]
  %v34 = vld [vmem:[%s0 + $0x50] sm:$0xf]
  %v35 = vld [vmem:[%s0 + $0x54] sm:$0xf]
  %v36 = vld [vmem:[%s0 + $0x58] sm:$0xf]
  %v37 = vld [vmem:[%s0 + $0x5c] sm:$0xf]
  %v38 = vld [vmem:[%s0 + $0x60] sm:$0xf]
  %v39 = vld [vmem:[%s0 + $0x64] sm:$0xf]
  %v40 = vld [vmem:[%s0 + $0x68] sm:$0xf]
  %v41 = vld [vmem:[%s0 + $0x6c] sm:$0xf]
  %v42 = vld [vmem:[%s0 + $0x70] sm:$0xf]
  %v43 = vld [vmem:[%s0 + $0x74] sm:$0xf]
  %v44 = vld [vmem:[%s0 + $0x78] sm:$0xf]
  %v45 = vld [vmem:[%s0 + $0x7c] sm:$0xf]
  %v46 = vld [vmem:[%s0 + $0x80] sm:$0xf]
  %v47 = vld [vmem:[%s0 + $0x84] sm:$0xf]
  %v48 = vld [vmem:[%s0 + $0x88] sm:$0xf]
  %v49 = vld [vmem:[%s0 + $0x8c] sm:$0xf]
  %v50 = vld [vmem:[%s0 + $0x90] sm:$0xf]
  %v51 = vld [vmem:[%s0 + $0x94] sm:$0xf]
  %v52 = vld [vmem:[%s0 + $0x98] sm:$0xf]
  %v53 = vld [vmem:[%s0 + $0x9c] sm:$0xf]
  %v54 = vld [vmem:[%s0 + $0xa0] sm:$0xf]
  %v55 = vld [vmem:[%s0 + $0xa4] sm:$0xf]
  %v56 = vld [vmem:[%s0 + $0xa8] sm:$0xf]
  %v57 = vld [vmem:[%s0 + $0xac] sm:$0xf]
  %v58 = vld [vmem:[%s0 + $0xb0] sm:$0xf]
  %v59 = vld [vmem:[%s0 + $0xb4] sm:$0xf]
  %v60 = vld [vmem:[%s0 + $0xb8] sm:$0xf]
  %v61 = vld [vmem:[%s0 + $0xbc] sm:$0xf]
  %v62 = vld [vmem:[%s0 + $0xc0] sm:$0xf]
  %v63 = vld [vmem:[%s0 + $0xc4] sm:$0xf]
  %v64 = vld [vmem:[%s0 + $0xc8] sm:$0xf]
  %v65 = vld [vmem:[%s0 + $0xcc] sm:$0xf]
  %v66 = vld [vmem:[%s0 + $0xd0] sm:$0xf]
  %v67 = vld [vmem:[%s0 + $0xd4] sm:$0xf]
  %v68 = vld [vmem:[%s0 + $0xd8] sm:$0xf]
  %v69 = vld [vmem:[%s0 + $0xdc] sm:$0xf]
  %v70 = vld [vmem:[%s0 + $0xe0] sm:$0xf]
  %v71 = vld [vmem:[%s0 + $0xe4] sm:$0xf]
  %v72 = vld [vmem:[%s0 + $0xe8] sm:$0xf]
  %v73 = vld [vmem:[%s0 + $0xec] sm:$0xf]
  %v74 = vld [vmem:[%s0 + $0xf0] sm:$0xf]
  %v75 = vld [vmem:[%s0 + $0xf4] sm:$0xf]
  %v76 = vld [vmem:[%s0 + $0xf8] sm:$0xf]
  %v77 = vld [vmem:[%s0 + $0xfc] sm:$0xf]
  %v78 = vunpack.c.l.bf16 %v14
  %v79 = vunpack.c.l.bf16 %v15
  %v80 = vunpack.c.l.bf16 %v16
  %v81 = vunpack.c.l.bf16 %v17
  %v82 = vunpack.c.l.bf16 %v18
  %v83 = vunpack.c.l.bf16 %v19
  %v84 = vunpack.c.l.bf16 %v20
  %v85 = vunpack.c.l.bf16 %v21
  %v86 = vunpack.c.l.bf16 %v22
  %v87 = vunpack.c.l.bf16 %v23
  %v88 = vunpack.c.l.bf16 %v24
  %v89 = vunpack.c.l.bf16 %v25
  %v90 = vunpack.c.l.bf16 %v26
  %v91 = vunpack.c.l.bf16 %v27
  %v92 = vunpack.c.l.bf16 %v28
  %v93 = vunpack.c.l.bf16 %v29
  %v94 = vunpack.c.l.bf16 %v30
  %v95 = vunpack.c.l.bf16 %v31
  %v96 = vunpack.c.l.bf16 %v32
  %v97 = vunpack.c.l.bf16 %v33
  %v98 = vunpack.c.l.bf16 %v34
  %v99 = vunpack.c.l.bf16 %v35
  %v100 = vunpack.c.l.bf16 %v36
  %v101 = vunpack.c.l.bf16 %v37
  %v102 = vunpack.c.l.bf16 %v38
  %v103 = vunpack.c.l.bf16 %v39
  %v104 = vunpack.c.l.bf16 %v40
  %v105 = vunpack.c.l.bf16 %v41
  %v106 = vunpack.c.l.bf16 %v42
  %v107 = vunpack.c.l.bf16 %v43
  %v108 = vunpack.c.l.bf16 %v44
  %v109 = vunpack.c.l.bf16 %v45
  %v110 = vunpack.c.l.bf16 %v46
  %v111 = vunpack.c.l.bf16 %v47
  %v112 = vunpack.c.l.bf16 %v48
  %v113 = vunpack.c.l.bf16 %v49
  %v114 = vunpack.c.l.bf16 %v50
  %v115 = vunpack.c.l.bf16 %v51
  %v116 = vunpack.c.l.bf16 %v52
  %v117 = vunpack.c.l.bf16 %v53
  %v118 = vunpack.c.l.bf16 %v54
  %v119 = vunpack.c.l.bf16 %v55
  %v120 = vunpack.c.l.bf16 %v56
  %v121 = vunpack.c.l.bf16 %v57
  %v122 = vunpack.c.l.bf16 %v58
  %v123 = vunpack.c.l.bf16 %v59
  %v124 = vunpack.c.l.bf16 %v60
  %v125 = vunpack.c.l.bf16 %v61
  %v126 = vunpack.c.l.bf16 %v62
  %v127 = vunpack.c.l.bf16 %v63
  %v128 = vunpack.c.l.bf16 %v64
  %v129 = vunpack.c.l.bf16 %v65
  %v130 = vunpack.c.l.bf16 %v66
  %v131 = vunpack.c.l.bf16 %v67
  %v132 = vunpack.c.l.bf16 %v68
  %v133 = vunpack.c.l.bf16 %v69
  %v134 = vunpack.c.l.bf16 %v70
  %v135 = vunpack.c.l.bf16 %v71
  %v136 = vunpack.c.l.bf16 %v72
  %v137 = vunpack.c.l.bf16 %v73
  %v138 = vunpack.c.l.bf16 %v74
  %v139 = vunpack.c.l.bf16 %v75
  %v140 = vunpack.c.l.bf16 %v76
  %v141 = vunpack.c.l.bf16 %v77
  %v142 = vld [vmem:[%s1] sm:$0x1]
  %v144 = vlaneseq
  %v145 = vshrl.u32 %v144, 7
  %v146 = vsub.s32 0, %v145
  %v147 = vrot.slane %v142, %v146
  %v149 = vmul.f32 %v78, %v147
  %v150 = vmul.f32 %v79, %v147
  %v151 = vmul.f32 %v80, %v147
  %v152 = vmul.f32 %v81, %v147
  %v153 = vmul.f32 %v82, %v147
  %v154 = vmul.f32 %v83, %v147
  %v155 = vmul.f32 %v84, %v147
  %v156 = vmul.f32 %v85, %v147
  %v157 = vmul.f32 %v86, %v147
  %v158 = vmul.f32 %v87, %v147
  %v159 = vmul.f32 %v88, %v147
  %v160 = vmul.f32 %v89, %v147
  %v161 = vmul.f32 %v90, %v147
  %v162 = vmul.f32 %v91, %v147
  %v163 = vmul.f32 %v92, %v147
  %v164 = vmul.f32 %v93, %v147
  %v165 = vmul.f32 %v94, %v147
  %v166 = vmul.f32 %v95, %v147
  %v167 = vmul.f32 %v96, %v147
  %v168 = vmul.f32 %v97, %v147
  %v169 = vmul.f32 %v98, %v147
  %v170 = vmul.f32 %v99, %v147
  %v171 = vmul.f32 %v100, %v147
  %v172 = vmul.f32 %v101, %v147
  %v173 = vmul.f32 %v102, %v147
  %v174 = vmul.f32 %v103, %v147
  %v175 = vmul.f32 %v104, %v147
  %v176 = vmul.f32 %v105, %v147
  %v177 = vmul.f32 %v106, %v147
  %v178 = vmul.f32 %v107, %v147
  %v179 = vmul.f32 %v108, %v147
  %v180 = vmul.f32 %v109, %v147
  %v181 = vmul.f32 %v110, %v147
  %v182 = vmul.f32 %v111, %v147
  %v183 = vmul.f32 %v112, %v147
  %v184 = vmul.f32 %v113, %v147
  %v185 = vmul.f32 %v114, %v147
  %v186 = vmul.f32 %v115, %v147
  %v187 = vmul.f32 %v116, %v147
  %v188 = vmul.f32 %v117, %v147
  %v189 = vmul.f32 %v118, %v147
  %v190 = vmul.f32 %v119, %v147
  %v191 = vmul.f32 %v120, %v147
  %v192 = vmul.f32 %v121, %v147
  %v193 = vmul.f32 %v122, %v147
  %v194 = vmul.f32 %v123, %v147
  %v195 = vmul.f32 %v124, %v147
  %v196 = vmul.f32 %v125, %v147
  %v197 = vmul.f32 %v126, %v147
  %v198 = vmul.f32 %v127, %v147
  %v199 = vmul.f32 %v128, %v147
  %v200 = vmul.f32 %v129, %v147
  %v201 = vmul.f32 %v130, %v147
  %v202 = vmul.f32 %v131, %v147
  %v203 = vmul.f32 %v132, %v147
  %v204 = vmul.f32 %v133, %v147
  %v205 = vmul.f32 %v134, %v147
  %v206 = vmul.f32 %v135, %v147
  %v207 = vmul.f32 %v136, %v147
  %v208 = vmul.f32 %v137, %v147
  %v209 = vmul.f32 %v138, %v147
  %v210 = vmul.f32 %v139, %v147
  %v211 = vmul.f32 %v140, %v147
  %v212 = vmul.f32 %v141, %v147
  %v213 = vld [vmem:[%s2] sm:$0x1]
  %v215 = vlaneseq
  %v216 = vshrl.u32 %v215, 7
  %v217 = vsub.s32 0, %v216
  %v218 = vrot.slane %v213, %v217
  %v220 = vadd.f32 %v149, %v218
  %v221 = vadd.f32 %v150, %v218
  %v222 = vadd.f32 %v151, %v218
  %v223 = vadd.f32 %v152, %v218
  %v224 = vadd.f32 %v153, %v218
  %v225 = vadd.f32 %v154, %v218
  %v226 = vadd.f32 %v155, %v218
  %v227 = vadd.f32 %v156, %v218
  %v228 = vadd.f32 %v157, %v218
  %v229 = vadd.f32 %v158, %v218
  %v230 = vadd.f32 %v159, %v218
  %v231 = vadd.f32 %v160, %v218
  %v232 = vadd.f32 %v161, %v218
  %v233 = vadd.f32 %v162, %v218
  %v234 = vadd.f32 %v163, %v218
  %v235 = vadd.f32 %v164, %v218
  %v236 = vadd.f32 %v165, %v218
  %v237 = vadd.f32 %v166, %v218
  %v238 = vadd.f32 %v167, %v218
  %v239 = vadd.f32 %v168, %v218
  %v240 = vadd.f32 %v169, %v218
  %v241 = vadd.f32 %v170, %v218
  %v242 = vadd.f32 %v171, %v218
  %v243 = vadd.f32 %v172, %v218
  %v244 = vadd.f32 %v173, %v218
  %v245 = vadd.f32 %v174, %v218
  %v246 = vadd.f32 %v175, %v218
  %v247 = vadd.f32 %v176, %v218
  %v248 = vadd.f32 %v177, %v218
  %v249 = vadd.f32 %v178, %v218
  %v250 = vadd.f32 %v179, %v218
  %v251 = vadd.f32 %v180, %v218
  %v252 = vadd.f32 %v181, %v218
  %v253 = vadd.f32 %v182, %v218
  %v254 = vadd.f32 %v183, %v218
  %v255 = vadd.f32 %v184, %v218
  %v256 = vadd.f32 %v185, %v218
  %v257 = vadd.f32 %v186, %v218
  %v258 = vadd.f32 %v187, %v218
  %v259 = vadd.f32 %v188, %v218
  %v260 = vadd.f32 %v189, %v218
  %v261 = vadd.f32 %v190, %v218
  %v262 = vadd.f32 %v191, %v218
  %v263 = vadd.f32 %v192, %v218
  %v264 = vadd.f32 %v193, %v218
  %v265 = vadd.f32 %v194, %v218
  %v266 = vadd.f32 %v195, %v218
  %v267 = vadd.f32 %v196, %v218
  %v268 = vadd.f32 %v197, %v218
  %v269 = vadd.f32 %v198, %v218
  %v270 = vadd.f32 %v199, %v218
  %v271 = vadd.f32 %v200, %v218
  %v272 = vadd.f32 %v201, %v218
  %v273 = vadd.f32 %v202, %v218
  %v274 = vadd.f32 %v203, %v218
  %v275 = vadd.f32 %v204, %v218
  %v276 = vadd.f32 %v205, %v218
  %v277 = vadd.f32 %v206, %v218
  %v278 = vadd.f32 %v207, %v218
  %v279 = vadd.f32 %v208, %v218
  %v280 = vadd.f32 %v209, %v218
  %v281 = vadd.f32 %v210, %v218
  %v282 = vadd.f32 %v211, %v218
  %v283 = vadd.f32 %v212, %v218
  %vm284 = vcmp.ge.f32.partialorder %v220, 0.0
  %vm285 = vcmp.ge.f32.partialorder %v221, 0.0
  %vm286 = vcmp.ge.f32.partialorder %v222, 0.0
  %vm287 = vcmp.ge.f32.partialorder %v223, 0.0
  %vm288 = vcmp.ge.f32.partialorder %v224, 0.0
  %vm289 = vcmp.ge.f32.partialorder %v225, 0.0
  %vm290 = vcmp.ge.f32.partialorder %v226, 0.0
  %vm291 = vcmp.ge.f32.partialorder %v227, 0.0
  %vm292 = vcmp.ge.f32.partialorder %v228, 0.0
  %vm293 = vcmp.ge.f32.partialorder %v229, 0.0
  %vm294 = vcmp.ge.f32.partialorder %v230, 0.0
  %vm295 = vcmp.ge.f32.partialorder %v231, 0.0
  %vm296 = vcmp.ge.f32.partialorder %v232, 0.0
  %vm297 = vcmp.ge.f32.partialorder %v233, 0.0
  %vm298 = vcmp.ge.f32.partialorder %v234, 0.0
  %vm299 = vcmp.ge.f32.partialorder %v235, 0.0
  %vm300 = vcmp.ge.f32.partialorder %v236, 0.0
  %vm301 = vcmp.ge.f32.partialorder %v237, 0.0
  %vm302 = vcmp.ge.f32.partialorder %v238, 0.0
  %vm303 = vcmp.ge.f32.partialorder %v239, 0.0
  %vm304 = vcmp.ge.f32.partialorder %v240, 0.0
  %vm305 = vcmp.ge.f32.partialorder %v241, 0.0
  %vm306 = vcmp.ge.f32.partialorder %v242, 0.0
  %vm307 = vcmp.ge.f32.partialorder %v243, 0.0
  %vm308 = vcmp.ge.f32.partialorder %v244, 0.0
  %vm309 = vcmp.ge.f32.partialorder %v245, 0.0
  %vm310 = vcmp.ge.f32.partialorder %v246, 0.0
  %vm311 = vcmp.ge.f32.partialorder %v247, 0.0
  %vm312 = vcmp.ge.f32.partialorder %v248, 0.0
  %vm313 = vcmp.ge.f32.partialorder %v249, 0.0
  %vm314 = vcmp.ge.f32.partialorder %v250, 0.0
  %vm315 = vcmp.ge.f32.partialorder %v251, 0.0
  %vm316 = vcmp.ge.f32.partialorder %v252, 0.0
  %vm317 = vcmp.ge.f32.partialorder %v253, 0.0
  %vm318 = vcmp.ge.f32.partialorder %v254, 0.0
  %vm319 = vcmp.ge.f32.partialorder %v255, 0.0
  %vm320 = vcmp.ge.f32.partialorder %v256, 0.0
  %vm321 = vcmp.ge.f32.partialorder %v257, 0.0
  %vm322 = vcmp.ge.f32.partialorder %v258, 0.0
  %vm323 = vcmp.ge.f32.partialorder %v259, 0.0
  %vm324 = vcmp.ge.f32.partialorder %v260, 0.0
  %vm325 = vcmp.ge.f32.partialorder %v261, 0.0
  %vm326 = vcmp.ge.f32.partialorder %v262, 0.0
  %vm327 = vcmp.ge.f32.partialorder %v263, 0.0
  %vm328 = vcmp.ge.f32.partialorder %v264, 0.0
  %vm329 = vcmp.ge.f32.partialorder %v265, 0.0
  %vm330 = vcmp.ge.f32.partialorder %v266, 0.0
  %vm331 = vcmp.ge.f32.partialorder %v267, 0.0
  %vm332 = vcmp.ge.f32.partialorder %v268, 0.0
  %vm333 = vcmp.ge.f32.partialorder %v269, 0.0
  %vm334 = vcmp.ge.f32.partialorder %v270, 0.0
  %vm335 = vcmp.ge.f32.partialorder %v271, 0.0
  %vm336 = vcmp.ge.f32.partialorder %v272, 0.0
  %vm337 = vcmp.ge.f32.partialorder %v273, 0.0
  %vm338 = vcmp.ge.f32.partialorder %v274, 0.0
  %vm339 = vcmp.ge.f32.partialorder %v275, 0.0
  %vm340 = vcmp.ge.f32.partialorder %v276, 0.0
  %vm341 = vcmp.ge.f32.partialorder %v277, 0.0
  %vm342 = vcmp.ge.f32.partialorder %v278, 0.0
  %vm343 = vcmp.ge.f32.partialorder %v279, 0.0
  %vm344 = vcmp.ge.f32.partialorder %v280, 0.0
  %vm345 = vcmp.ge.f32.partialorder %v281, 0.0
  %vm346 = vcmp.ge.f32.partialorder %v282, 0.0
  %vm347 = vcmp.ge.f32.partialorder %v283, 0.0
  %v348 = vmul.f32 %v220, 0.2
  %v349 = vmul.f32 %v221, 0.2
  %v350 = vmul.f32 %v222, 0.2
  %v351 = vmul.f32 %v223, 0.2
  %v352 = vmul.f32 %v224, 0.2
  %v353 = vmul.f32 %v225, 0.2
  %v354 = vmul.f32 %v226, 0.2
  %v355 = vmul.f32 %v227, 0.2
  %v356 = vmul.f32 %v228, 0.2
  %v357 = vmul.f32 %v229, 0.2
  %v358 = vmul.f32 %v230, 0.2
  %v359 = vmul.f32 %v231, 0.2
  %v360 = vmul.f32 %v232, 0.2
  %v361 = vmul.f32 %v233, 0.2
  %v362 = vmul.f32 %v234, 0.2
  %v363 = vmul.f32 %v235, 0.2
  %v364 = vmul.f32 %v236, 0.2
  %v365 = vmul.f32 %v237, 0.2
  %v366 = vmul.f32 %v238, 0.2
  %v367 = vmul.f32 %v239, 0.2
  %v368 = vmul.f32 %v240, 0.2
  %v369 = vmul.f32 %v241, 0.2
  %v370 = vmul.f32 %v242, 0.2
  %v371 = vmul.f32 %v243, 0.2
  %v372 = vmul.f32 %v244, 0.2
  %v373 = vmul.f32 %v245, 0.2
  %v374 = vmul.f32 %v246, 0.2
  %v375 = vmul.f32 %v247, 0.2
  %v376 = vmul.f32 %v248, 0.2
  %v377 = vmul.f32 %v249, 0.2
  %v378 = vmul.f32 %v250, 0.2
  %v379 = vmul.f32 %v251, 0.2
  %v380 = vmul.f32 %v252, 0.2
  %v381 = vmul.f32 %v253, 0.2
  %v382 = vmul.f32 %v254, 0.2
  %v383 = vmul.f32 %v255, 0.2
  %v384 = vmul.f32 %v256, 0.2
  %v385 = vmul.f32 %v257, 0.2
  %v386 = vmul.f32 %v258, 0.2
  %v387 = vmul.f32 %v259, 0.2
  %v388 = vmul.f32 %v260, 0.2
  %v389 = vmul.f32 %v261, 0.2
  %v390 = vmul.f32 %v262, 0.2
  %v391 = vmul.f32 %v263, 0.2
  %v392 = vmul.f32 %v264, 0.2
  %v393 = vmul.f32 %v265, 0.2
  %v394 = vmul.f32 %v266, 0.2
  %v395 = vmul.f32 %v267, 0.2
  %v396 = vmul.f32 %v268, 0.2
  %v397 = vmul.f32 %v269, 0.2
  %v398 = vmul.f32 %v270, 0.2
  %v399 = vmul.f32 %v271, 0.2
  %v400 = vmul.f32 %v272, 0.2
  %v401 = vmul.f32 %v273, 0.2
  %v402 = vmul.f32 %v274, 0.2
  %v403 = vmul.f32 %v275, 0.2
  %v404 = vmul.f32 %v276, 0.2
  %v405 = vmul.f32 %v277, 0.2
  %v406 = vmul.f32 %v278, 0.2
  %v407 = vmul.f32 %v279, 0.2
  %v408 = vmul.f32 %v280, 0.2
  %v409 = vmul.f32 %v281, 0.2
  %v410 = vmul.f32 %v282, 0.2
  %v411 = vmul.f32 %v283, 0.2
  %v412 = vsel %vm284, %v220, %v348
  %v413 = vsel %vm285, %v221, %v349
  %v414 = vsel %vm286, %v222, %v350
  %v415 = vsel %vm287, %v223, %v351
  %v416 = vsel %vm288, %v224, %v352
  %v417 = vsel %vm289, %v225, %v353
  %v418 = vsel %vm290, %v226, %v354
  %v419 = vsel %vm291, %v227, %v355
  %v420 = vsel %vm292, %v228, %v356
  %v421 = vsel %vm293, %v229, %v357
  %v422 = vsel %vm294, %v230, %v358
  %v423 = vsel %vm295, %v231, %v359
  %v424 = vsel %vm296, %v232, %v360
  %v425 = vsel %vm297, %v233, %v361
  %v426 = vsel %vm298, %v234, %v362
  %v427 = vsel %vm299, %v235, %v363
  %v428 = vsel %vm300, %v236, %v364
  %v429 = vsel %vm301, %v237, %v365
  %v430 = vsel %vm302, %v238, %v366
  %v431 = vsel %vm303, %v239, %v367
  %v432 = vsel %vm304, %v240, %v368
  %v433 = vsel %vm305, %v241, %v369
  %v434 = vsel %vm306, %v242, %v370
  %v435 = vsel %vm307, %v243, %v371
  %v436 = vsel %vm308, %v244, %v372
  %v437 = vsel %vm309, %v245, %v373
  %v438 = vsel %vm310, %v246, %v374
  %v439 = vsel %vm311, %v247, %v375
  %v440 = vsel %vm312, %v248, %v376
  %v441 = vsel %vm313, %v249, %v377
  %v442 = vsel %vm314, %v250, %v378
  %v443 = vsel %vm315, %v251, %v379
  %v444 = vsel %vm316, %v252, %v380
  %v445 = vsel %vm317, %v253, %v381
  %v446 = vsel %vm318, %v254, %v382
  %v447 = vsel %vm319, %v255, %v383
  %v448 = vsel %vm320, %v256, %v384
  %v449 = vsel %vm321, %v257, %v385
  %v450 = vsel %vm322, %v258, %v386
  %v451 = vsel %vm323, %v259, %v387
  %v452 = vsel %vm324, %v260, %v388
  %v453 = vsel %vm325, %v261, %v389
  %v454 = vsel %vm326, %v262, %v390
  %v455 = vsel %vm327, %v263, %v391
  %v456 = vsel %vm328, %v264, %v392
  %v457 = vsel %vm329, %v265, %v393
  %v458 = vsel %vm330, %v266, %v394
  %v459 = vsel %vm331, %v267, %v395
  %v460 = vsel %vm332, %v268, %v396
  %v461 = vsel %vm333, %v269, %v397
  %v462 = vsel %vm334, %v270, %v398
  %v463 = vsel %vm335, %v271, %v399
  %v464 = vsel %vm336, %v272, %v400
  %v465 = vsel %vm337, %v273, %v401
  %v466 = vsel %vm338, %v274, %v402
  %v467 = vsel %vm339, %v275, %v403
  %v468 = vsel %vm340, %v276, %v404
  %v469 = vsel %vm341, %v277, %v405
  %v470 = vsel %vm342, %v278, %v406
  %v471 = vsel %vm343, %v279, %v407
  %v472 = vsel %vm344, %v280, %v408
  %v473 = vsel %vm345, %v281, %v409
  %v474 = vsel %vm346, %v282, %v410
  %v475 = vsel %vm347, %v283, %v411
  %vm476 = vcmask 64512
  %477 = vst.msk [vmem:[%s3] sm:$0xff] %vm476, %v412
  %478 = vst.msk [vmem:[%s3 + $0x8] sm:$0xff] %vm476, %v413
  %479 = vst.msk [vmem:[%s3 + $0x10] sm:$0xff] %vm476, %v414
  %480 = vst.msk [vmem:[%s3 + $0x18] sm:$0xff] %vm476, %v415
  %481 = vst.msk [vmem:[%s3 + $0x20] sm:$0xff] %vm476, %v416
  %482 = vst.msk [vmem:[%s3 + $0x28] sm:$0xff] %vm476, %v417
  %483 = vst.msk [vmem:[%s3 + $0x30] sm:$0xff] %vm476, %v418
  %484 = vst.msk [vmem:[%s3 + $0x38] sm:$0xff] %vm476, %v419
  %485 = vst.msk [vmem:[%s3 + $0x40] sm:$0xff] %vm476, %v420
  %486 = vst.msk [vmem:[%s3 + $0x48] sm:$0xff] %vm476, %v421
  %487 = vst.msk [vmem:[%s3 + $0x50] sm:$0xff] %vm476, %v422
  %488 = vst.msk [vmem:[%s3 + $0x58] sm:$0xff] %vm476, %v423
  %489 = vst.msk [vmem:[%s3 + $0x60] sm:$0xff] %vm476, %v424
  %490 = vst.msk [vmem:[%s3 + $0x68] sm:$0xff] %vm476, %v425
  %491 = vst.msk [vmem:[%s3 + $0x70] sm:$0xff] %vm476, %v426
  %492 = vst.msk [vmem:[%s3 + $0x78] sm:$0xff] %vm476, %v427
  %493 = vst.msk [vmem:[%s3 + $0x80] sm:$0xff] %vm476, %v428
  %494 = vst.msk [vmem:[%s3 + $0x88] sm:$0xff] %vm476, %v429
  %495 = vst.msk [vmem:[%s3 + $0x90] sm:$0xff] %vm476, %v430
  %496 = vst.msk [vmem:[%s3 + $0x98] sm:$0xff] %vm476, %v431
  %497 = vst.msk [vmem:[%s3 + $0xa0] sm:$0xff] %vm476, %v432
  %498 = vst.msk [vmem:[%s3 + $0xa8] sm:$0xff] %vm476, %v433
  %499 = vst.msk [vmem:[%s3 + $0xb0] sm:$0xff] %vm476, %v434
  %500 = vst.msk [vmem:[%s3 + $0xb8] sm:$0xff] %vm476, %v435
  %501 = vst.msk [vmem:[%s3 + $0xc0] sm:$0xff] %vm476, %v436
  %502 = vst.msk [vmem:[%s3 + $0xc8] sm:$0xff] %vm476, %v437
  %503 = vst.msk [vmem:[%s3 + $0xd0] sm:$0xff] %vm476, %v438
  %504 = vst.msk [vmem:[%s3 + $0xd8] sm:$0xff] %vm476, %v439
  %505 = vst.msk [vmem:[%s3 + $0xe0] sm:$0xff] %vm476, %v440
  %506 = vst.msk [vmem:[%s3 + $0xe8] sm:$0xff] %vm476, %v441
  %507 = vst.msk [vmem:[%s3 + $0xf0] sm:$0xff] %vm476, %v442
  %508 = vst.msk [vmem:[%s3 + $0xf8] sm:$0xff] %vm476, %v443
  %509 = vst.msk [vmem:[%s3 + $0x100] sm:$0xff] %vm476, %v444
  %510 = vst.msk [vmem:[%s3 + $0x108] sm:$0xff] %vm476, %v445
  %511 = vst.msk [vmem:[%s3 + $0x110] sm:$0xff] %vm476, %v446
  %512 = vst.msk [vmem:[%s3 + $0x118] sm:$0xff] %vm476, %v447
  %513 = vst.msk [vmem:[%s3 + $0x120] sm:$0xff] %vm476, %v448
  %514 = vst.msk [vmem:[%s3 + $0x128] sm:$0xff] %vm476, %v449
  %515 = vst.msk [vmem:[%s3 + $0x130] sm:$0xff] %vm476, %v450
  %516 = vst.msk [vmem:[%s3 + $0x138] sm:$0xff] %vm476, %v451
  %517 = vst.msk [vmem:[%s3 + $0x140] sm:$0xff] %vm476, %v452
  %518 = vst.msk [vmem:[%s3 + $0x148] sm:$0xff] %vm476, %v453
  %519 = vst.msk [vmem:[%s3 + $0x150] sm:$0xff] %vm476, %v454
  %520 = vst.msk [vmem:[%s3 + $0x158] sm:$0xff] %vm476, %v455
  %521 = vst.msk [vmem:[%s3 + $0x160] sm:$0xff] %vm476, %v456
  %522 = vst.msk [vmem:[%s3 + $0x168] sm:$0xff] %vm476, %v457
  %523 = vst.msk [vmem:[%s3 + $0x170] sm:$0xff] %vm476, %v458
  %524 = vst.msk [vmem:[%s3 + $0x178] sm:$0xff] %vm476, %v459
  %525 = vst.msk [vmem:[%s3 + $0x180] sm:$0xff] %vm476, %v460
  %526 = vst.msk [vmem:[%s3 + $0x188] sm:$0xff] %vm476, %v461
  %527 = vst.msk [vmem:[%s3 + $0x190] sm:$0xff] %vm476, %v462
  %528 = vst.msk [vmem:[%s3 + $0x198] sm:$0xff] %vm476, %v463
  %529 = vst.msk [vmem:[%s3 + $0x1a0] sm:$0xff] %vm476, %v464
  %530 = vst.msk [vmem:[%s3 + $0x1a8] sm:$0xff] %vm476, %v465
  %531 = vst.msk [vmem:[%s3 + $0x1b0] sm:$0xff] %vm476, %v466
  %532 = vst.msk [vmem:[%s3 + $0x1b8] sm:$0xff] %vm476, %v467
  %533 = vst.msk [vmem:[%s3 + $0x1c0] sm:$0xff] %vm476, %v468
  %534 = vst.msk [vmem:[%s3 + $0x1c8] sm:$0xff] %vm476, %v469
  %535 = vst.msk [vmem:[%s3 + $0x1d0] sm:$0xff] %vm476, %v470
  %536 = vst.msk [vmem:[%s3 + $0x1d8] sm:$0xff] %vm476, %v471
  %537 = vst.msk [vmem:[%s3 + $0x1e0] sm:$0xff] %vm476, %v472
  %538 = vst.msk [vmem:[%s3 + $0x1e8] sm:$0xff] %vm476, %v473
  %539 = vst.msk [vmem:[%s3 + $0x1f0] sm:$0xff] %vm476, %v474
  %540 = vst.msk [vmem:[%s3 + $0x1f8] sm:$0xff] %vm476, %v475
  // Predicated region
  $region14: #{conv_block.3} parent=0 // pred_check
    _
  $region15: #{conv_block.3} parent=0 // pred_check_branch
    %542 = sbr.rel (0) target = $region17
  $region16: #{conv_block.3} parent=0 // pred_region
    _
  $region17: #{conv_block.3} parent=0 // pred_fallthru
    _
  // Predicated region
  $region18: #{conv_block.3} parent=0 // pred_check
    _
  $region19: #{conv_block.3} parent=0 // pred_check_branch
    %544 = sbr.rel (0) target = $region21
  $region20: #{conv_block.3} parent=0 // pred_region
    _
  $region21: #{conv_block.3} parent=0 // pred_fallthru
    _

// kernel: conv_block.2
$region0: #{conv_block.2}
  #allocation0 [shape = 'u32[]', space=smem, size = 0x4, offset = 0x4, fixed_abs, tag = 'smem constant byte address 0x4 - core index']
  #allocation1 [shape = 'u32[144,128]{1,0:T(1,128)}', space=vmem, size = 0x12000, scoped, tag = 'internal scratch']
  %s0 = inlined_call_operand.vmem [shape: bf16[512,36], index: 0, kind: input, shape index: {}]
  %s1 = inlined_call_operand.vmem [shape: bf16[36,8], index: 1, kind: input, shape index: {}]
  %s2 = inlined_call_operand.vmem [shape: bf16[512,8], index: 2, kind: output, shape index: {0}]
  %s3 = inlined_call_operand.vmem [shape: f32[8,8], index: 3, kind: output, shape index: {1}]
  %4 = xla_tuple %s2, %s3
  %s5 = sld [smem:[#allocation0]]
  $region30: #{conv_block.2} parent=0
    _
  %s7 = ssub.s32 1, %s5
  %s8 = scalar_select 0, %s7, %s5
  // Predicated region
  $region2: #{conv_block.2} parent=0 // pred_check
    _
  $region3: #{conv_block.2} parent=0 // pred_check_branch
    %10 = sbr.rel (0) target = $region5
  $region4: #{conv_block.2} parent=0 // pred_region
    _
  $region5: #{conv_block.2} parent=0 // pred_fallthru
    _
  // Predicated region
  $region6: #{conv_block.2} parent=0 // pred_check
    _
  $region7: #{conv_block.2} parent=0 // pred_check_branch
    %12 = sbr.rel (0) target = $region9
  $region8: #{conv_block.2} parent=0 // pred_region
    _
  $region9: #{conv_block.2} parent=0 // pred_fallthru
    _
  %v14 = vld [vmem:[%s0] sm:$0xf]
  %v15 = vld [vmem:[%s0 + $0x4] sm:$0xf]
  %v16 = vld [vmem:[%s0 + $0x8] sm:$0xf]
  %v17 = vld [vmem:[%s0 + $0xc] sm:$0xf]
  %v18 = vld [vmem:[%s0 + $0x10] sm:$0xf]
  %v19 = vld [vmem:[%s0 + $0x14] sm:$0xf]
  %v20 = vld [vmem:[%s0 + $0x18] sm:$0xf]
  %v21 = vld [vmem:[%s0 + $0x1c] sm:$0xf]
  %v22 = vld [vmem:[%s0 + $0x20] sm:$0xf]
  %v23 = vld [vmem:[%s0 + $0x24] sm:$0xf]
  %v24 = vld [vmem:[%s0 + $0x28] sm:$0xf]
  %v25 = vld [vmem:[%s0 + $0x2c] sm:$0xf]
  %v26 = vld [vmem:[%s0 + $0x30] sm:$0xf]
  %v27 = vld [vmem:[%s0 + $0x34] sm:$0xf]
  %v28 = vld [vmem:[%s0 + $0x38] sm:$0xf]
  %v29 = vld [vmem:[%s0 + $0x3c] sm:$0xf]
  %v30 = vld [vmem:[%s0 + $0x40] sm:$0xf]
  %v31 = vld [vmem:[%s0 + $0x44] sm:$0xf]
  %v32 = vld [vmem:[%s0 + $0x48] sm:$0xf]
  %v33 = vld [vmem:[%s0 + $0x4c] sm:$0xf]
  %v34 = vld [vmem:[%s0 + $0x50] sm:$0xf]
  %v35 = vld [vmem:[%s0 + $0x54] sm:$0xf]
  %v36 = vld [vmem:[%s0 + $0x58] sm:$0xf]
  %v37 = vld [vmem:[%s0 + $0x5c] sm:$0xf]
  %v38 = vld [vmem:[%s0 + $0x60] sm:$0xf]
  %v39 = vld [vmem:[%s0 + $0x64] sm:$0xf]
  %v40 = vld [vmem:[%s0 + $0x68] sm:$0xf]
  %v41 = vld [vmem:[%s0 + $0x6c] sm:$0xf]
  %v42 = vld [vmem:[%s0 + $0x70] sm:$0xf]
  %v43 = vld [vmem:[%s0 + $0x74] sm:$0xf]
  %v44 = vld [vmem:[%s0 + $0x78] sm:$0xf]
  %v45 = vld [vmem:[%s0 + $0x7c] sm:$0xf]
  %v46 = vld [vmem:[%s0 + $0x80] sm:$0xf]
  %v47 = vld [vmem:[%s0 + $0x84] sm:$0xf]
  %v48 = vld [vmem:[%s0 + $0x88] sm:$0xf]
  %v49 = vld [vmem:[%s0 + $0x8c] sm:$0xf]
  %v50 = vld [vmem:[%s0 + $0x90] sm:$0xf]
  %v51 = vld [vmem:[%s0 + $0x94] sm:$0xf]
  %v52 = vld [vmem:[%s0 + $0x98] sm:$0xf]
  %v53 = vld [vmem:[%s0 + $0x9c] sm:$0xf]
  %v54 = vld [vmem:[%s0 + $0xa0] sm:$0xf]
  %v55 = vld [vmem:[%s0 + $0xa4] sm:$0xf]
  %v56 = vld [vmem:[%s0 + $0xa8] sm:$0xf]
  %v57 = vld [vmem:[%s0 + $0xac] sm:$0xf]
  %v58 = vld [vmem:[%s0 + $0xb0] sm:$0xf]
  %v59 = vld [vmem:[%s0 + $0xb4] sm:$0xf]
  %v60 = vld [vmem:[%s0 + $0xb8] sm:$0xf]
  %v61 = vld [vmem:[%s0 + $0xbc] sm:$0xf]
  %v62 = vld [vmem:[%s0 + $0xc0] sm:$0xf]
  %v63 = vld [vmem:[%s0 + $0xc4] sm:$0xf]
  %v64 = vld [vmem:[%s0 + $0xc8] sm:$0xf]
  %v65 = vld [vmem:[%s0 + $0xcc] sm:$0xf]
  %v66 = vld [vmem:[%s0 + $0xd0] sm:$0xf]
  %v67 = vld [vmem:[%s0 + $0xd4] sm:$0xf]
  %v68 = vld [vmem:[%s0 + $0xd8] sm:$0xf]
  %v69 = vld [vmem:[%s0 + $0xdc] sm:$0xf]
  %v70 = vld [vmem:[%s0 + $0xe0] sm:$0xf]
  %v71 = vld [vmem:[%s0 + $0xe4] sm:$0xf]
  %v72 = vld [vmem:[%s0 + $0xe8] sm:$0xf]
  %v73 = vld [vmem:[%s0 + $0xec] sm:$0xf]
  %v74 = vld [vmem:[%s0 + $0xf0] sm:$0xf]
  %v75 = vld [vmem:[%s0 + $0xf4] sm:$0xf]
  %v76 = vld [vmem:[%s0 + $0xf8] sm:$0xf]
  %v77 = vld [vmem:[%s0 + $0xfc] sm:$0xf]
  %v78 = vld [vmem:[%s1] sm:$0xf]
  %v79 = vld [vmem:[%s1 + $0x4] sm:$0xf]
  %v80 = vld [vmem:[%s1 + $0x8] sm:$0xf]
  %v81 = vld [vmem:[%s1 + $0xc] sm:$0xf]
  %v82 = vld [vmem:[%s1 + $0x10] sm:$0x3]
  %v147 = vunpack.c.l.b16 %v14
  %v148 = vunpack.c.l.b16 %v15
  %v149 = vunpack.c.l.b16 %v16
  %v150 = vunpack.c.l.b16 %v17
  %v151 = vunpack.c.l.b16 %v18
  %v152 = vunpack.c.l.b16 %v19
  %v153 = vunpack.c.l.b16 %v20
  %v154 = vunpack.c.l.b16 %v21
  %v155 = vunpack.c.l.b16 %v22
  %v156 = vunpack.c.l.b16 %v23
  %v157 = vunpack.c.l.b16 %v24
  %v158 = vunpack.c.l.b16 %v25
  %v159 = vunpack.c.l.b16 %v26
  %v160 = vunpack.c.l.b16 %v27
  %v161 = vunpack.c.l.b16 %v28
  %v162 = vunpack.c.l.b16 %v29
  %v163 = vunpack.c.l.b16 %v30
  %v164 = vunpack.c.l.b16 %v31
  %v165 = vunpack.c.l.b16 %v32
  %v166 = vunpack.c.l.b16 %v33
  %v167 = vunpack.c.l.b16 %v34
  %v168 = vunpack.c.l.b16 %v35
  %v169 = vunpack.c.l.b16 %v36
  %v170 = vunpack.c.l.b16 %v37
  %v171 = vunpack.c.l.b16 %v38
  %v172 = vunpack.c.l.b16 %v39
  %v173 = vunpack.c.l.b16 %v40
  %v174 = vunpack.c.l.b16 %v41
  %v175 = vunpack.c.l.b16 %v42
  %v176 = vunpack.c.l.b16 %v43
  %v177 = vunpack.c.l.b16 %v44
  %v178 = vunpack.c.l.b16 %v45
  %v179 = vunpack.c.l.b16 %v46
  %v180 = vunpack.c.l.b16 %v47
  %v181 = vunpack.c.l.b16 %v48
  %v182 = vunpack.c.l.b16 %v49
  %v183 = vunpack.c.l.b16 %v50
  %v184 = vunpack.c.l.b16 %v51
  %v185 = vunpack.c.l.b16 %v52
  %v186 = vunpack.c.l.b16 %v53
  %v187 = vunpack.c.l.b16 %v54
  %v188 = vunpack.c.l.b16 %v55
  %v189 = vunpack.c.l.b16 %v56
  %v190 = vunpack.c.l.b16 %v57
  %v191 = vunpack.c.l.b16 %v58
  %v192 = vunpack.c.l.b16 %v59
  %v193 = vunpack.c.l.b16 %v60
  %v194 = vunpack.c.l.b16 %v61
  %v195 = vunpack.c.l.b16 %v62
  %v196 = vunpack.c.l.b16 %v63
  %v197 = vunpack.c.l.b16 %v64
  %v198 = vunpack.c.l.b16 %v65
  %v199 = vunpack.c.l.b16 %v66
  %v200 = vunpack.c.l.b16 %v67
  %v201 = vunpack.c.l.b16 %v68
  %v202 = vunpack.c.l.b16 %v69
  %v203 = vunpack.c.l.b16 %v70
  %v204 = vunpack.c.l.b16 %v71
  %v205 = vunpack.c.l.b16 %v72
  %v206 = vunpack.c.l.b16 %v73
  %v207 = vunpack.c.l.b16 %v74
  %v208 = vunpack.c.l.b16 %v75
  %v209 = vunpack.c.l.b16 %v76
  %v210 = vunpack.c.l.b16 %v77
  %v211 = vpack.c.b16 %v148, %v147
  %v212 = vpack.c.b16 %v150, %v149
  %v213 = vpack.c.b16 %v152, %v151
  %v214 = vpack.c.b16 %v154, %v153
  %v215 = vpack.c.b16 %v156, %v155
  %v216 = vpack.c.b16 %v158, %v157
  %v217 = vpack.c.b16 %v160, %v159
  %v218 = vpack.c.b16 %v162, %v161
  %v219 = vpack.c.b16 %v164, %v163
  %v220 = vpack.c.b16 %v166, %v165
  %v221 = vpack.c.b16 %v168, %v167
  %v222 = vpack.c.b16 %v170, %v169
  %v223 = vpack.c.b16 %v172, %v171
  %v224 = vpack.c.b16 %v174, %v173
  %v225 = vpack.c.b16 %v176, %v175
  %v226 = vpack.c.b16 %v178, %v177
  %v227 = vpack.c.b16 %v180, %v179
  %v228 = vpack.c.b16 %v182, %v181
  %v229 = vpack.c.b16 %v184, %v183
  %v230 = vpack.c.b16 %v186, %v185
  %v231 = vpack.c.b16 %v188, %v187
  %v232 = vpack.c.b16 %v190, %v189
  %v233 = vpack.c.b16 %v192, %v191
  %v234 = vpack.c.b16 %v194, %v193
  %v235 = vpack.c.b16 %v196, %v195
  %v236 = vpack.c.b16 %v198, %v197
  %v237 = vpack.c.b16 %v200, %v199
  %v238 = vpack.c.b16 %v202, %v201
  %v239 = vpack.c.b16 %v204, %v203
  %v240 = vpack.c.b16 %v206, %v205
  %v241 = vpack.c.b16 %v208, %v207
  %v242 = vpack.c.b16 %v210, %v209
  %v248 = vunpack.c.l.b16 %v78
  %v249 = vunpack.c.l.b16 %v79
  %v250 = vunpack.c.l.b16 %v80
  %v251 = vunpack.c.l.b16 %v81
  %v252 = vunpack.c.l.b16 %v82
  %v253 = vpack.c.b16 %v249, %v248
  %v254 = vpack.c.b16 %v251, %v250
  %v255 = vpack.c.b16 %v252, %v252
  %vm258 = vcmask 293888
  %v260 = vsel %vm258, %v211, 0
  %v263 = vsel %vm258, %v212, 0
  %v266 = vsel %vm258, %v213, 0
  %v269 = vsel %vm258, %v214, 0
  %v272 = vsel %vm258, %v215, 0
  %v275 = vsel %vm258, %v216, 0
  %v278 = vsel %vm258, %v217, 0
  %v281 = vsel %vm258, %v218, 0
  %v284 = vsel %vm258, %v219, 0
  %v287 = vsel %vm258, %v220, 0
  %v290 = vsel %vm258, %v221, 0
  %v293 = vsel %vm258, %v222, 0
  %v296 = vsel %vm258, %v223, 0
  %v299 = vsel %vm258, %v224, 0
  %v302 = vsel %vm258, %v225, 0
  %v305 = vsel %vm258, %v226, 0
  %v308 = vsel %vm258, %v227, 0
  %v311 = vsel %vm258, %v228, 0
  %v314 = vsel %vm258, %v229, 0
  %v317 = vsel %vm258, %v230, 0
  %v320 = vsel %vm258, %v231, 0
  %v323 = vsel %vm258, %v232, 0
  %v326 = vsel %vm258, %v233, 0
  %v329 = vsel %vm258, %v234, 0
  %v332 = vsel %vm258, %v235, 0
  %v335 = vsel %vm258, %v236, 0
  %v338 = vsel %vm258, %v237, 0
  %v341 = vsel %vm258, %v238, 0
  %v344 = vsel %vm258, %v239, 0
  %v347 = vsel %vm258, %v240, 0
  %v350 = vsel %vm258, %v241, 0
  %v353 = vsel %vm258, %v242, 0
  %vm355 = vcmask 1041408
  %v357 = vsel %vm355, %v255, 0
  %359 = vmatprep.subr.bf16.mxu0 0
  %360 = vmatpush1.bf16.msra.mxu0 0
  %361 = vmatprep.subr.bf16.mxu0 0
  %362 = vmatpush1.bf16.msra.mxu0 0
  %363 = vmatprep.subr.bf16.mxu0 0
  %364 = vmatpush1.bf16.msra.mxu0 0
  %365 = vmatprep.subr.bf16.mxu0 0
  %366 = vmatpush1.bf16.msra.mxu0 0
  %367 = vmatprep.subr.bf16.mxu0 0
  %368 = vmatpush1.bf16.msra.mxu0 0
  %369 = vmatprep.subr.bf16.mxu0 0
  %370 = vmatpush1.bf16.msra.mxu0 %v357
  %371 = vmatprep.subr.bf16.mxu0 0
  %372 = vmatpush1.bf16.msra.mxu0 %v254
  %373 = vmatprep.subr.bf16.mxu0 0
  %374 = vmatpush1.bf16.msra.mxu0 %v253
  %375 = vmatprep.subr.bf16.mxu0 0
  %376 = vmatpush2.bf16.msra.mxu0 0
  %377 = vmatprep.subr.bf16.mxu0 0
  %378 = vmatpush2.bf16.msra.mxu0 0
  %379 = vmatprep.subr.bf16.mxu0 0
  %380 = vmatpush2.bf16.msra.mxu0 0
  %381 = vmatprep.subr.bf16.mxu0 0
  %382 = vmatpush2.bf16.msra.mxu0 0
  %383 = vmatprep.subr.bf16.mxu0 0
  %384 = vmatpush2.bf16.msra.mxu0 0
  %385 = vmatprep.subr.bf16.mxu0 0
  %386 = vmatpush2.bf16.msra.mxu0 0
  %387 = vmatprep.subr.bf16.mxu0 0
  %388 = vmatpush2.bf16.msra.mxu0 0
  %389 = vmatprep.subr.bf16.mxu0 0
  %390 = vmatpush2.bf16.msra.mxu0 0
  %391 = vmatprep.mubr.bf16.mxu0 0
  %392 = vmatmul.mubr.bf16.gmra.mxu0 %v260
  %v393 = vpop.f32.mrf.mxu0
  %v394 = vadd.f32 0.0, %v393
  %v395 = vpop.f32.mrf.mxu0
  %v396 = vpop.f32.mrf.mxu0
  %v397 = vadd.f32 0.0, %v396
  %v398 = vpop.f32.mrf.mxu0
  %399 = vmatprep.mubr.bf16.mxu0 0
  %400 = vmatmul.mubr.bf16.gmra.mxu0 %v263
  %v401 = vpop.f32.mrf.mxu0
  %v402 = vadd.f32 0.0, %v401
  %v403 = vpop.f32.mrf.mxu0
  %v404 = vpop.f32.mrf.mxu0
  %v405 = vadd.f32 0.0, %v404
  %v406 = vpop.f32.mrf.mxu0
  %407 = vmatprep.mubr.bf16.mxu0 0
  %408 = vmatmul.mubr.bf16.gmra.mxu0 %v266
  %v409 = vpop.f32.mrf.mxu0
  %v410 = vadd.f32 0.0, %v409
  %v411 = vpop.f32.mrf.mxu0
  %v412 = vpop.f32.mrf.mxu0
  %v413 = vadd.f32 0.0, %v412
  %v414 = vpop.f32.mrf.mxu0
  %415 = vmatprep.mubr.bf16.mxu0 0
  %416 = vmatmul.mubr.bf16.gmra.mxu0 %v269
  %v417 = vpop.f32.mrf.mxu0
  %v418 = vadd.f32 0.0, %v417
  %v419 = vpop.f32.mrf.mxu0
  %v420 = vpop.f32.mrf.mxu0
  %v421 = vadd.f32 0.0, %v420
  %v422 = vpop.f32.mrf.mxu0
  %423 = vmatprep.mubr.bf16.mxu0 0
  %424 = vmatmul.mubr.bf16.gmra.mxu0 %v272
  %v425 = vpop.f32.mrf.mxu0
  %v426 = vadd.f32 0.0, %v425
  %v427 = vpop.f32.mrf.mxu0
  %v428 = vpop.f32.mrf.mxu0
  %v429 = vadd.f32 0.0, %v428
  %v430 = vpop.f32.mrf.mxu0
  %431 = vmatprep.mubr.bf16.mxu0 0
  %432 = vmatmul.mubr.bf16.gmra.mxu0 %v275
  %v433 = vpop.f32.mrf.mxu0
  %v434 = vadd.f32 0.0, %v433
  %v435 = vpop.f32.mrf.mxu0
  %v436 = vpop.f32.mrf.mxu0
  %v437 = vadd.f32 0.0, %v436
  %v438 = vpop.f32.mrf.mxu0
  %439 = vmatprep.mubr.bf16.mxu0 0
  %440 = vmatmul.mubr.bf16.gmra.mxu0 %v278
  %v441 = vpop.f32.mrf.mxu0
  %v442 = vadd.f32 0.0, %v441
  %v443 = vpop.f32.mrf.mxu0
  %v444 = vpop.f32.mrf.mxu0
  %v445 = vadd.f32 0.0, %v444
  %v446 = vpop.f32.mrf.mxu0
  %447 = vmatprep.mubr.bf16.mxu0 0
  %448 = vmatmul.mubr.bf16.gmra.mxu0 %v281
  %v449 = vpop.f32.mrf.mxu0
  %v450 = vadd.f32 0.0, %v449
  %v451 = vpop.f32.mrf.mxu0
  %v452 = vpop.f32.mrf.mxu0
  %v453 = vadd.f32 0.0, %v452
  %v454 = vpop.f32.mrf.mxu0
  %455 = vmatprep.mubr.bf16.mxu0 0
  %456 = vmatmul.mubr.bf16.gmra.mxu0 %v284
  %v457 = vpop.f32.mrf.mxu0
  %v458 = vadd.f32 0.0, %v457
  %v459 = vpop.f32.mrf.mxu0
  %v460 = vpop.f32.mrf.mxu0
  %v461 = vadd.f32 0.0, %v460
  %v462 = vpop.f32.mrf.mxu0
  %463 = vmatprep.mubr.bf16.mxu0 0
  %464 = vmatmul.mubr.bf16.gmra.mxu0 %v287
  %v465 = vpop.f32.mrf.mxu0
  %v466 = vadd.f32 0.0, %v465
  %v467 = vpop.f32.mrf.mxu0
  %v468 = vpop.f32.mrf.mxu0
  %v469 = vadd.f32 0.0, %v468
  %v470 = vpop.f32.mrf.mxu0
  %471 = vmatprep.mubr.bf16.mxu0 0
  %472 = vmatmul.mubr.bf16.gmra.mxu0 %v290
  %v473 = vpop.f32.mrf.mxu0
  %v474 = vadd.f32 0.0, %v473
  %v475 = vpop.f32.mrf.mxu0
  %v476 = vpop.f32.mrf.mxu0
  %v477 = vadd.f32 0.0, %v476
  %v478 = vpop.f32.mrf.mxu0
  %479 = vmatprep.mubr.bf16.mxu0 0
  %480 = vmatmul.mubr.bf16.gmra.mxu0 %v293
  %v481 = vpop.f32.mrf.mxu0
  %v482 = vadd.f32 0.0, %v481
  %v483 = vpop.f32.mrf.mxu0
  %v484 = vpop.f32.mrf.mxu0
  %v485 = vadd.f32 0.0, %v484
  %v486 = vpop.f32.mrf.mxu0
  %487 = vmatprep.mubr.bf16.mxu0 0
  %488 = vmatmul.mubr.bf16.gmra.mxu0 %v296
  %v489 = vpop.f32.mrf.mxu0
  %v490 = vadd.f32 0.0, %v489
  %v491 = vpop.f32.mrf.mxu0
  %v492 = vpop.f32.mrf.mxu0
  %v493 = vadd.f32 0.0, %v492
  %v494 = vpop.f32.mrf.mxu0
  %495 = vmatprep.mubr.bf16.mxu0 0
  %496 = vmatmul.mubr.bf16.gmra.mxu0 %v299
  %v497 = vpop.f32.mrf.mxu0
  %v498 = vadd.f32 0.0, %v497
  %v499 = vpop.f32.mrf.mxu0
  %v500 = vpop.f32.mrf.mxu0
  %v501 = vadd.f32 0.0, %v500
  %v502 = vpop.f32.mrf.mxu0
  %503 = vmatprep.mubr.bf16.mxu0 0
  %504 = vmatmul.mubr.bf16.gmra.mxu0 %v302
  %v505 = vpop.f32.mrf.mxu0
  %v506 = vadd.f32 0.0, %v505
  %v507 = vpop.f32.mrf.mxu0
  %v508 = vpop.f32.mrf.mxu0
  %v509 = vadd.f32 0.0, %v508
  %v510 = vpop.f32.mrf.mxu0
  %511 = vmatprep.mubr.bf16.mxu0 0
  %512 = vmatmul.mubr.bf16.gmra.mxu0 %v305
  %v513 = vpop.f32.mrf.mxu0
  %v514 = vadd.f32 0.0, %v513
  %v515 = vpop.f32.mrf.mxu0
  %v516 = vpop.f32.mrf.mxu0
  %v517 = vadd.f32 0.0, %v516
  %v518 = vpop.f32.mrf.mxu0
  %519 = vmatprep.mubr.bf16.mxu0 0
  %520 = vmatmul.mubr.bf16.gmra.mxu0 %v308
  %v521 = vpop.f32.mrf.mxu0
  %v522 = vadd.f32 0.0, %v521
  %v523 = vpop.f32.mrf.mxu0
  %v524 = vpop.f32.mrf.mxu0
  %v525 = vadd.f32 0.0, %v524
  %v526 = vpop.f32.mrf.mxu0
  %527 = vmatprep.mubr.bf16.mxu0 0
  %528 = vmatmul.mubr.bf16.gmra.mxu0 %v311
  %v529 = vpop.f32.mrf.mxu0
  %v530 = vadd.f32 0.0, %v529
  %v531 = vpop.f32.mrf.mxu0
  %v532 = vpop.f32.mrf.mxu0
  %v533 = vadd.f32 0.0, %v532
  %v534 = vpop.f32.mrf.mxu0
  %535 = vmatprep.mubr.bf16.mxu0 0
  %536 = vmatmul.mubr.bf16.gmra.mxu0 %v314
  %v537 = vpop.f32.mrf.mxu0
  %v538 = vadd.f32 0.0, %v537
  %v539 = vpop.f32.mrf.mxu0
  %v540 = vpop.f32.mrf.mxu0
  %v541 = vadd.f32 0.0, %v540
  %v542 = vpop.f32.mrf.mxu0
  %543 = vmatprep.mubr.bf16.mxu0 0
  %544 = vmatmul.mubr.bf16.gmra.mxu0 %v317
  %v545 = vpop.f32.mrf.mxu0
  %v546 = vadd.f32 0.0, %v545
  %v547 = vpop.f32.mrf.mxu0
  %v548 = vpop.f32.mrf.mxu0
  %v549 = vadd.f32 0.0, %v548
  %v550 = vpop.f32.mrf.mxu0
  %551 = vmatprep.mubr.bf16.mxu0 0
  %552 = vmatmul.mubr.bf16.gmra.mxu0 %v320
  %v553 = vpop.f32.mrf.mxu0
  %v554 = vadd.f32 0.0, %v553
  %v555 = vpop.f32.mrf.mxu0
  %v556 = vpop.f32.mrf.mxu0
  %v557 = vadd.f32 0.0, %v556
  %v558 = vpop.f32.mrf.mxu0
  %559 = vmatprep.mubr.bf16.mxu0 0
  %560 = vmatmul.mubr.bf16.gmra.mxu0 %v323
  %v561 = vpop.f32.mrf.mxu0
  %v562 = vadd.f32 0.0, %v561
  %v563 = vpop.f32.mrf.mxu0
  %v564 = vpop.f32.mrf.mxu0
  %v565 = vadd.f32 0.0, %v564
  %v566 = vpop.f32.mrf.mxu0
  %567 = vmatprep.mubr.bf16.mxu0 0
  %568 = vmatmul.mubr.bf16.gmra.mxu0 %v326
  %v569 = vpop.f32.mrf.mxu0
  %v570 = vadd.f32 0.0, %v569
  %v571 = vpop.f32.mrf.mxu0
  %v572 = vpop.f32.mrf.mxu0
  %v573 = vadd.f32 0.0, %v572
  %v574 = vpop.f32.mrf.mxu0
  %575 = vmatprep.mubr.bf16.mxu0 0
  %576 = vmatmul.mubr.bf16.gmra.mxu0 %v329
  %v577 = vpop.f32.mrf.mxu0
  %v578 = vadd.f32 0.0, %v577
  %v579 = vpop.f32.mrf.mxu0
  %v580 = vpop.f32.mrf.mxu0
  %v581 = vadd.f32 0.0, %v580
  %v582 = vpop.f32.mrf.mxu0
  %583 = vmatprep.mubr.bf16.mxu0 0
  %584 = vmatmul.mubr.bf16.gmra.mxu0 %v332
  %v585 = vpop.f32.mrf.mxu0
  %v586 = vadd.f32 0.0, %v585
  %v587 = vpop.f32.mrf.mxu0
  %v588 = vpop.f32.mrf.mxu0
  %v589 = vadd.f32 0.0, %v588
  %v590 = vpop.f32.mrf.mxu0
  %591 = vmatprep.mubr.bf16.mxu0 0
  %592 = vmatmul.mubr.bf16.gmra.mxu0 %v335
  %v593 = vpop.f32.mrf.mxu0
  %v594 = vadd.f32 0.0, %v593
  %v595 = vpop.f32.mrf.mxu0
  %v596 = vpop.f32.mrf.mxu0
  %v597 = vadd.f32 0.0, %v596
  %v598 = vpop.f32.mrf.mxu0
  %599 = vmatprep.mubr.bf16.mxu0 0
  %600 = vmatmul.mubr.bf16.gmra.mxu0 %v338
  %v601 = vpop.f32.mrf.mxu0
  %v602 = vadd.f32 0.0, %v601
  %v603 = vpop.f32.mrf.mxu0
  %v604 = vpop.f32.mrf.mxu0
  %v605 = vadd.f32 0.0, %v604
  %v606 = vpop.f32.mrf.mxu0
  %607 = vmatprep.mubr.bf16.mxu0 0
  %608 = vmatmul.mubr.bf16.gmra.mxu0 %v341
  %v609 = vpop.f32.mrf.mxu0
  %v610 = vadd.f32 0.0, %v609
  %v611 = vpop.f32.mrf.mxu0
  %v612 = vpop.f32.mrf.mxu0
  %v613 = vadd.f32 0.0, %v612
  %v614 = vpop.f32.mrf.mxu0
  %615 = vmatprep.mubr.bf16.mxu0 0
  %616 = vmatmul.mubr.bf16.gmra.mxu0 %v344
  %v617 = vpop.f32.mrf.mxu0
  %v618 = vadd.f32 0.0, %v617
  %v619 = vpop.f32.mrf.mxu0
  %v620 = vpop.f32.mrf.mxu0
  %v621 = vadd.f32 0.0, %v620
  %v622 = vpop.f32.mrf.mxu0
  %623 = vmatprep.mubr.bf16.mxu0 0
  %624 = vmatmul.mubr.bf16.gmra.mxu0 %v347
  %v625 = vpop.f32.mrf.mxu0
  %v626 = vadd.f32 0.0, %v625
  %v627 = vpop.f32.mrf.mxu0
  %v628 = vpop.f32.mrf.mxu0
  %v629 = vadd.f32 0.0, %v628
  %v630 = vpop.f32.mrf.mxu0
  %631 = vmatprep.mubr.bf16.mxu0 0
  %632 = vmatmul.mubr.bf16.gmra.mxu0 %v350
  %v633 = vpop.f32.mrf.mxu0
  %v634 = vadd.f32 0.0, %v633
  %v635 = vpop.f32.mrf.mxu0
  %v636 = vpop.f32.mrf.mxu0
  %v637 = vadd.f32 0.0, %v636
  %v638 = vpop.f32.mrf.mxu0
  %639 = vmatprep.mubr.bf16.mxu0 0
  %640 = vmatmul.mubr.bf16.gmra.mxu0 %v353
  %v641 = vpop.f32.mrf.mxu0
  %v642 = vadd.f32 0.0, %v641
  %v643 = vpop.f32.mrf.mxu0
  %v644 = vpop.f32.mrf.mxu0
  %v645 = vadd.f32 0.0, %v644
  %v646 = vpop.f32.mrf.mxu0
  %647 = vdwg.mxu0
  %v648 = vpack.c.bf16 %v397, %v394
  %v649 = vpack.c.bf16 %v405, %v402
  %v650 = vpack.c.bf16 %v413, %v410
  %v651 = vpack.c.bf16 %v421, %v418
  %v652 = vpack.c.bf16 %v429, %v426
  %v653 = vpack.c.bf16 %v437, %v434
  %v654 = vpack.c.bf16 %v445, %v442
  %v655 = vpack.c.bf16 %v453, %v450
  %v656 = vpack.c.bf16 %v461, %v458
  %v657 = vpack.c.bf16 %v469, %v466
  %v658 = vpack.c.bf16 %v477, %v474
  %v659 = vpack.c.bf16 %v485, %v482
  %v660 = vpack.c.bf16 %v493, %v490
  %v661 = vpack.c.bf16 %v501, %v498
  %v662 = vpack.c.bf16 %v509, %v506
  %v663 = vpack.c.bf16 %v517, %v514
  %v664 = vpack.c.bf16 %v525, %v522
  %v665 = vpack.c.bf16 %v533, %v530
  %v666 = vpack.c.bf16 %v541, %v538
  %v667 = vpack.c.bf16 %v549, %v546
  %v668 = vpack.c.bf16 %v557, %v554
  %v669 = vpack.c.bf16 %v565, %v562
  %v670 = vpack.c.bf16 %v573, %v570
  %v671 = vpack.c.bf16 %v581, %v578
  %v672 = vpack.c.bf16 %v589, %v586
  %v673 = vpack.c.bf16 %v597, %v594
  %v674 = vpack.c.bf16 %v605, %v602
  %v675 = vpack.c.bf16 %v613, %v610
  %v676 = vpack.c.bf16 %v621, %v618
  %v677 = vpack.c.bf16 %v629, %v626
  %v678 = vpack.c.bf16 %v637, %v634
  %v679 = vpack.c.bf16 %v645, %v642
  %v712 = vunpack.c.l.b16 %v648
  %v713 = vunpack.c.h.b16 %v648
  %v714 = vunpack.c.l.b16 %v649
  %v715 = vunpack.c.h.b16 %v649
  %v716 = vunpack.c.l.b16 %v650
  %v717 = vunpack.c.h.b16 %v650
  %v718 = vunpack.c.l.b16 %v651
  %v719 = vunpack.c.h.b16 %v651
  %v720 = vunpack.c.l.b16 %v652
  %v721 = vunpack.c.h.b16 %v652
  %v722 = vunpack.c.l.b16 %v653
  %v723 = vunpack.c.h.b16 %v653
  %v724 = vunpack.c.l.b16 %v654
  %v725 = vunpack.c.h.b16 %v654
  %v726 = vunpack.c.l.b16 %v655
  %v727 = vunpack.c.h.b16 %v655
  %v728 = vunpack.c.l.b16 %v656
  %v729 = vunpack.c.h.b16 %v656
  %v730 = vunpack.c.l.b16 %v657
  %v731 = vunpack.c.h.b16 %v657
  %v732 = vunpack.c.l.b16 %v658
  %v733 = vunpack.c.h.b16 %v658
  %v734 = vunpack.c.l.b16 %v659
  %v735 = vunpack.c.h.b16 %v659
  %v736 = vunpack.c.l.b16 %v660
  %v737 = vunpack.c.h.b16 %v660
  %v738 = vunpack.c.l.b16 %v661
  %v739 = vunpack.c.h.b16 %v661
  %v740 = vunpack.c.l.b16 %v662
  %v741 = vunpack.c.h.b16 %v662
  %v742 = vunpack.c.l.b16 %v663
  %v743 = vunpack.c.h.b16 %v663
  %v744 = vunpack.c.l.b16 %v664
  %v745 = vunpack.c.h.b16 %v664
  %v746 = vunpack.c.l.b16 %v665
  %v747 = vunpack.c.h.b16 %v665
  %v748 = vunpack.c.l.b16 %v666
  %v749 = vunpack.c.h.b16 %v666
  %v750 = vunpack.c.l.b16 %v667
  %v751 = vunpack.c.h.b16 %v667
  %v752 = vunpack.c.l.b16 %v668
  %v753 = vunpack.c.h.b16 %v668
  %v754 = vunpack.c.l.b16 %v669
  %v755 = vunpack.c.h.b16 %v669
  %v756 = vunpack.c.l.b16 %v670
  %v757 = vunpack.c.h.b16 %v670
  %v758 = vunpack.c.l.b16 %v671
  %v759 = vunpack.c.h.b16 %v671
  %v760 = vunpack.c.l.b16 %v672
  %v761 = vunpack.c.h.b16 %v672
  %v762 = vunpack.c.l.b16 %v673
  %v763 = vunpack.c.h.b16 %v673
  %v764 = vunpack.c.l.b16 %v674
  %v765 = vunpack.c.h.b16 %v674
  %v766 = vunpack.c.l.b16 %v675
  %v767 = vunpack.c.h.b16 %v675
  %v768 = vunpack.c.l.b16 %v676
  %v769 = vunpack.c.h.b16 %v676
  %v770 = vunpack.c.l.b16 %v677
  %v771 = vunpack.c.h.b16 %v677
  %v772 = vunpack.c.l.b16 %v678
  %v773 = vunpack.c.h.b16 %v678
  %v774 = vunpack.c.l.b16 %v679
  %v775 = vunpack.c.h.b16 %v679
  %v776 = vpack.c.b16 %v712, %v712
  %v777 = vpack.c.b16 %v713, %v713
  %v778 = vpack.c.b16 %v714, %v714
  %v779 = vpack.c.b16 %v715, %v715
  %v780 = vpack.c.b16 %v716, %v716
  %v781 = vpack.c.b16 %v717, %v717
  %v782 = vpack.c.b16 %v718, %v718
  %v783 = vpack.c.b16 %v719, %v719
  %v784 = vpack.c.b16 %v720, %v720
  %v785 = vpack.c.b16 %v721, %v721
  %v786 = vpack.c.b16 %v722, %v722
  %v787 = vpack.c.b16 %v723, %v723
  %v788 = vpack.c.b16 %v724, %v724
  %v789 = vpack.c.b16 %v725, %v725
  %v790 = vpack.c.b16 %v726, %v726
  %v791 = vpack.c.b16 %v727, %v727
  %v792 = vpack.c.b16 %v728, %v728
  %v793 = vpack.c.b16 %v729, %v729
  %v794 = vpack.c.b16 %v730, %v730
  %v795 = vpack.c.b16 %v731, %v731
  %v796 = vpack.c.b16 %v732, %v732
  %v797 = vpack.c.b16 %v733, %v733
  %v798 = vpack.c.b16 %v734, %v734
  %v799 = vpack.c.b16 %v735, %v735
  %v800 = vpack.c.b16 %v736, %v736
  %v801 = vpack.c.b16 %v737, %v737
  %v802 = vpack.c.b16 %v738, %v738
  %v803 = vpack.c.b16 %v739, %v739
  %v804 = vpack.c.b16 %v740, %v740
  %v805 = vpack.c.b16 %v741, %v741
  %v806 = vpack.c.b16 %v742, %v742
  %v807 = vpack.c.b16 %v743, %v743
  %v808 = vpack.c.b16 %v744, %v744
  %v809 = vpack.c.b16 %v745, %v745
  %v810 = vpack.c.b16 %v746, %v746
  %v811 = vpack.c.b16 %v747, %v747
  %v812 = vpack.c.b16 %v748, %v748
  %v813 = vpack.c.b16 %v749, %v749
  %v814 = vpack.c.b16 %v750, %v750
  %v815 = vpack.c.b16 %v751, %v751
  %v816 = vpack.c.b16 %v752, %v752
  %v817 = vpack.c.b16 %v753, %v753
  %v818 = vpack.c.b16 %v754, %v754
  %v819 = vpack.c.b16 %v755, %v755
  %v820 = vpack.c.b16 %v756, %v756
  %v821 = vpack.c.b16 %v757, %v757
  %v822 = vpack.c.b16 %v758, %v758
  %v823 = vpack.c.b16 %v759, %v759
  %v824 = vpack.c.b16 %v760, %v760
  %v825 = vpack.c.b16 %v761, %v761
  %v826 = vpack.c.b16 %v762, %v762
  %v827 = vpack.c.b16 %v763, %v763
  %v828 = vpack.c.b16 %v764, %v764
  %v829 = vpack.c.b16 %v765, %v765
  %v830 = vpack.c.b16 %v766, %v766
  %v831 = vpack.c.b16 %v767, %v767
  %v832 = vpack.c.b16 %v768, %v768
  %v833 = vpack.c.b16 %v769, %v769
  %v834 = vpack.c.b16 %v770, %v770
  %v835 = vpack.c.b16 %v771, %v771
  %v836 = vpack.c.b16 %v772, %v772
  %v837 = vpack.c.b16 %v773, %v773
  %v838 = vpack.c.b16 %v774, %v774
  %v839 = vpack.c.b16 %v775, %v775
  %vm904 = vcmask 60416
  %905 = vst.msk [vmem:[%s2] sm:$0xf] %vm904, %v776
  %906 = vst.msk [vmem:[%s2 + $0x4] sm:$0xf] %vm904, %v777
  %907 = vst.msk [vmem:[%s2 + $0x8] sm:$0xf] %vm904, %v778
  %908 = vst.msk [vmem:[%s2 + $0xc] sm:$0xf] %vm904, %v779
  %909 = vst.msk [vmem:[%s2 + $0x10] sm:$0xf] %vm904, %v780
  %910 = vst.msk [vmem:[%s2 + $0x14] sm:$0xf] %vm904, %v781
  %911 = vst.msk [vmem:[%s2 + $0x18] sm:$0xf] %vm904, %v782
  %912 = vst.msk [vmem:[%s2 + $0x1c] sm:$0xf] %vm904, %v783
  %913 = vst.msk [vmem:[%s2 + $0x20] sm:$0xf] %vm904, %v784
  %914 = vst.msk [vmem:[%s2 + $0x24] sm:$0xf] %vm904, %v785
  %915 = vst.msk [vmem:[%s2 + $0x28] sm:$0xf] %vm904, %v786
  %916 = vst.msk [vmem:[%s2 + $0x2c] sm:$0xf] %vm904, %v787
  %917 = vst.msk [vmem:[%s2 + $0x30] sm:$0xf] %vm904, %v788
  %918 = vst.msk [vmem:[%s2 + $0x34] sm:$0xf] %vm904, %v789
  %919 = vst.msk [vmem:[%s2 + $0x38] sm:$0xf] %vm904, %v790
  %920 = vst.msk [vmem:[%s2 + $0x3c] sm:$0xf] %vm904, %v791
  %921 = vst.msk [vmem:[%s2 + $0x40] sm:$0xf] %vm904, %v792
  %922 = vst.msk [vmem:[%s2 + $0x44] sm:$0xf] %vm904, %v793
  %923 = vst.msk [vmem:[%s2 + $0x48] sm:$0xf] %vm904, %v794
  %924 = vst.msk [vmem:[%s2 + $0x4c] sm:$0xf] %vm904, %v795
  %925 = vst.msk [vmem:[%s2 + $0x50] sm:$0xf] %vm904, %v796
  %926 = vst.msk [vmem:[%s2 + $0x54] sm:$0xf] %vm904, %v797
  %927 = vst.msk [vmem:[%s2 + $0x58] sm:$0xf] %vm904, %v798
  %928 = vst.msk [vmem:[%s2 + $0x5c] sm:$0xf] %vm904, %v799
  %929 = vst.msk [vmem:[%s2 + $0x60] sm:$0xf] %vm904, %v800
  %930 = vst.msk [vmem:[%s2 + $0x64] sm:$0xf] %vm904, %v801
  %931 = vst.msk [vmem:[%s2 + $0x68] sm:$0xf] %vm904, %v802
  %932 = vst.msk [vmem:[%s2 + $0x6c] sm:$0xf] %vm904, %v803
  %933 = vst.msk [vmem:[%s2 + $0x70] sm:$0xf] %vm904, %v804
  %934 = vst.msk [vmem:[%s2 + $0x74] sm:$0xf] %vm904, %v805
  %935 = vst.msk [vmem:[%s2 + $0x78] sm:$0xf] %vm904, %v806
  %936 = vst.msk [vmem:[%s2 + $0x7c] sm:$0xf] %vm904, %v807
  %937 = vst.msk [vmem:[%s2 + $0x80] sm:$0xf] %vm904, %v808
  %938 = vst.msk [vmem:[%s2 + $0x84] sm:$0xf] %vm904, %v809
  %939 = vst.msk [vmem:[%s2 + $0x88] sm:$0xf] %vm904, %v810
  %940 = vst.msk [vmem:[%s2 + $0x8c] sm:$0xf] %vm904, %v811
  %941 = vst.msk [vmem:[%s2 + $0x90] sm:$0xf] %vm904, %v812
  %942 = vst.msk [vmem:[%s2 + $0x94] sm:$0xf] %vm904, %v813
  %943 = vst.msk [vmem:[%s2 + $0x98] sm:$0xf] %vm904, %v814
  %944 = vst.msk [vmem:[%s2 + $0x9c] sm:$0xf] %vm904, %v815
  %945 = vst.msk [vmem:[%s2 + $0xa0] sm:$0xf] %vm904, %v816
  %946 = vst.msk [vmem:[%s2 + $0xa4] sm:$0xf] %vm904, %v817
  %947 = vst.msk [vmem:[%s2 + $0xa8] sm:$0xf] %vm904, %v818
  %948 = vst.msk [vmem:[%s2 + $0xac] sm:$0xf] %vm904, %v819
  %949 = vst.msk [vmem:[%s2 + $0xb0] sm:$0xf] %vm904, %v820
  %950 = vst.msk [vmem:[%s2 + $0xb4] sm:$0xf] %vm904, %v821
  %951 = vst.msk [vmem:[%s2 + $0xb8] sm:$0xf] %vm904, %v822
  %952 = vst.msk [vmem:[%s2 + $0xbc] sm:$0xf] %vm904, %v823
  %953 = vst.msk [vmem:[%s2 + $0xc0] sm:$0xf] %vm904, %v824
  %954 = vst.msk [vmem:[%s2 + $0xc4] sm:$0xf] %vm904, %v825
  %955 = vst.msk [vmem:[%s2 + $0xc8] sm:$0xf] %vm904, %v826
  %956 = vst.msk [vmem:[%s2 + $0xcc] sm:$0xf] %vm904, %v827
  %957 = vst.msk [vmem:[%s2 + $0xd0] sm:$0xf] %vm904, %v828
  %958 = vst.msk [vmem:[%s2 + $0xd4] sm:$0xf] %vm904, %v829
  %959 = vst.msk [vmem:[%s2 + $0xd8] sm:$0xf] %vm904, %v830
  %960 = vst.msk [vmem:[%s2 + $0xdc] sm:$0xf] %vm904, %v831
  %961 = vst.msk [vmem:[%s2 + $0xe0] sm:$0xf] %vm904, %v832
  %962 = vst.msk [vmem:[%s2 + $0xe4] sm:$0xf] %vm904, %v833
  %963 = vst.msk [vmem:[%s2 + $0xe8] sm:$0xf] %vm904, %v834
  %964 = vst.msk [vmem:[%s2 + $0xec] sm:$0xf] %vm904, %v835
  %965 = vst.msk [vmem:[%s2 + $0xf0] sm:$0xf] %vm904, %v836
  %966 = vst.msk [vmem:[%s2 + $0xf4] sm:$0xf] %vm904, %v837
  %967 = vst.msk [vmem:[%s2 + $0xf8] sm:$0xf] %vm904, %v838
  %968 = vst.msk [vmem:[%s2 + $0xfc] sm:$0xf] %vm904, %v839
  %p969 = scmp.eq.s32.totalorder 0, 0
  // Predicated region
  $region10: #{conv_block.2} parent=0 // pred_check
    %p970 = pneg %p969
  $region11: #{conv_block.2} parent=0 // pred_check_branch
    %972 = sbr.rel (%p970) target = $region13
  $region12: #{conv_block.2} parent=0 // pred_region
    %vm973 = vcmask 64512
    %974 = vst.msk [vmem:[%s3] sm:$0xff] %vm973, 0.0
  $region13: #{conv_block.2} parent=0 // pred_fallthru
    _
  %v975 = vld [vmem:[%s3] sm:$0x1]
  %vm976 = vcmask 64512
  %v977 = vsel %vm976, %v394, 0.0
  %v978 = vsel %vm976, %v397, 0.0
  %v979 = vadd.f32 %v977, %v978
  %v980 = vsel %vm976, %v402, 0.0
  %v981 = vadd.f32 %v979, %v980
  %v982 = vsel %vm976, %v405, 0.0
  %v983 = vadd.f32 %v981, %v982
  %v984 = vsel %vm976, %v410, 0.0
  %v985 = vadd.f32 %v983, %v984
  %v986 = vsel %vm976, %v413, 0.0
  %v987 = vadd.f32 %v985, %v986
  %v988 = vsel %vm976, %v418, 0.0
  %v989 = vadd.f32 %v987, %v988
  %v990 = vsel %vm976, %v421, 0.0
  %v991 = vadd.f32 %v989, %v990
  %v992 = vsel %vm976, %v426, 0.0
  %v993 = vadd.f32 %v991, %v992
  %v994 = vsel %vm976, %v429, 0.0
  %v995 = vadd.f32 %v993, %v994
  %v996 = vsel %vm976, %v434, 0.0
  %v997 = vadd.f32 %v995, %v996
  %v998 = vsel %vm976, %v437, 0.0
  %v999 = vadd.f32 %v997, %v998
  %v1000 = vsel %vm976, %v442, 0.0
  %v1001 = vadd.f32 %v999, %v1000
  %v1002 = vsel %vm976, %v445, 0.0
  %v1003 = vadd.f32 %v1001, %v1002
  %v1004 = vsel %vm976, %v450, 0.0
  %v1005 = vadd.f32 %v1003, %v1004
  %v1006 = vsel %vm976, %v453, 0.0
  %v1007 = vadd.f32 %v1005, %v1006
  %v1008 = vsel %vm976, %v458, 0.0
  %v1009 = vadd.f32 %v1007, %v1008
  %v1010 = vsel %vm976, %v461, 0.0
  %v1011 = vadd.f32 %v1009, %v1010
  %v1012 = vsel %vm976, %v466, 0.0
  %v1013 = vadd.f32 %v1011, %v1012
  %v1014 = vsel %vm976, %v469, 0.0
  %v1015 = vadd.f32 %v1013, %v1014
  %v1016 = vsel %vm976, %v474, 0.0
  %v1017 = vadd.f32 %v1015, %v1016
  %v1018 = vsel %vm976, %v477, 0.0
  %v1019 = vadd.f32 %v1017, %v1018
  %v1020 = vsel %vm976, %v482, 0.0
  %v1021 = vadd.f32 %v1019, %v1020
  %v1022 = vsel %vm976, %v485, 0.0
  %v1023 = vadd.f32 %v1021, %v1022
  %v1024 = vsel %vm976, %v490, 0.0
  %v1025 = vadd.f32 %v1023, %v1024
  %v1026 = vsel %vm976, %v493, 0.0
  %v1027 = vadd.f32 %v1025, %v1026
  %v1028 = vsel %vm976, %v498, 0.0
  %v1029 = vadd.f32 %v1027, %v1028
  %v1030 = vsel %vm976, %v501, 0.0
  %v1031 = vadd.f32 %v1029, %v1030
  %v1032 = vsel %vm976, %v506, 0.0
  %v1033 = vadd.f32 %v1031, %v1032
  %v1034 = vsel %vm976, %v509, 0.0
  %v1035 = vadd.f32 %v1033, %v1034
  %v1036 = vsel %vm976, %v514, 0.0
  %v1037 = vadd.f32 %v1035, %v1036
  %v1038 = vsel %vm976, %v517, 0.0
  %v1039 = vadd.f32 %v1037, %v1038
  %v1040 = vsel %vm976, %v522, 0.0
  %v1041 = vadd.f32 %v1039, %v1040
  %v1042 = vsel %vm976, %v525, 0.0
  %v1043 = vadd.f32 %v1041, %v1042
  %v1044 = vsel %vm976, %v530, 0.0
  %v1045 = vadd.f32 %v1043, %v1044
  %v1046 = vsel %vm976, %v533, 0.0
  %v1047 = vadd.f32 %v1045, %v1046
  %v1048 = vsel %vm976, %v538, 0.0
  %v1049 = vadd.f32 %v1047, %v1048
  %v1050 = vsel %vm976, %v541, 0.0
  %v1051 = vadd.f32 %v1049, %v1050
  %v1052 = vsel %vm976, %v546, 0.0
  %v1053 = vadd.f32 %v1051, %v1052
  %v1054 = vsel %vm976, %v549, 0.0
  %v1055 = vadd.f32 %v1053, %v1054
  %v1056 = vsel %vm976, %v554, 0.0
  %v1057 = vadd.f32 %v1055, %v1056
  %v1058 = vsel %vm976, %v557, 0.0
  %v1059 = vadd.f32 %v1057, %v1058
  %v1060 = vsel %vm976, %v562, 0.0
  %v1061 = vadd.f32 %v1059, %v1060
  %v1062 = vsel %vm976, %v565, 0.0
  %v1063 = vadd.f32 %v1061, %v1062
  %v1064 = vsel %vm976, %v570, 0.0
  %v1065 = vadd.f32 %v1063, %v1064
  %v1066 = vsel %vm976, %v573, 0.0
  %v1067 = vadd.f32 %v1065, %v1066
  %v1068 = vsel %vm976, %v578, 0.0
  %v1069 = vadd.f32 %v1067, %v1068
  %v1070 = vsel %vm976, %v581, 0.0
  %v1071 = vadd.f32 %v1069, %v1070
  %v1072 = vsel %vm976, %v586, 0.0
  %v1073 = vadd.f32 %v1071, %v1072
  %v1074 = vsel %vm976, %v589, 0.0
  %v1075 = vadd.f32 %v1073, %v1074
  %v1076 = vsel %vm976, %v594, 0.0
  %v1077 = vadd.f32 %v1075, %v1076
  %v1078 = vsel %vm976, %v597, 0.0
  %v1079 = vadd.f32 %v1077, %v1078
  %v1080 = vsel %vm976, %v602, 0.0
  %v1081 = vadd.f32 %v1079, %v1080
  %v1082 = vsel %vm976, %v605, 0.0
  %v1083 = vadd.f32 %v1081, %v1082
  %v1084 = vsel %vm976, %v610, 0.0
  %v1085 = vadd.f32 %v1083, %v1084
  %v1086 = vsel %vm976, %v613, 0.0
  %v1087 = vadd.f32 %v1085, %v1086
  %v1088 = vsel %vm976, %v618, 0.0
  %v1089 = vadd.f32 %v1087, %v1088
  %v1090 = vsel %vm976, %v621, 0.0
  %v1091 = vadd.f32 %v1089, %v1090
  %v1092 = vsel %vm976, %v626, 0.0
  %v1093 = vadd.f32 %v1091, %v1092
  %v1094 = vsel %vm976, %v629, 0.0
  %v1095 = vadd.f32 %v1093, %v1094
  %v1096 = vsel %vm976, %v634, 0.0
  %v1097 = vadd.f32 %v1095, %v1096
  %v1098 = vsel %vm976, %v637, 0.0
  %v1099 = vadd.f32 %v1097, %v1098
  %v1100 = vsel %vm976, %v642, 0.0
  %v1101 = vadd.f32 %v1099, %v1100
  %v1102 = vsel %vm976, %v645, 0.0
  %v1103 = vadd.f32 %v1101, %v1102
  %v1104 = vrot.slane %v1103, 4
  %v1105 = vadd.f32 %v1103, %v1104
  %v1106 = vrot.slane %v1105, 2
  %v1107 = vadd.f32 %v1105, %v1106
  %v1108 = vrot.slane %v1107, 1
  %v1109 = vadd.f32 %v1107, %v1108
  %v1110 = vadd.f32 %v975, %v1109
  %vm1111 = vcmask 57344
  %1112 = vst.msk [vmem:[%s3] sm:$0x1] %vm1111, %v1110
  %v1113 = vld [vmem:[%s3 + $0x1] sm:$0x1]
  %v1114 = vmul.f32 %v394, %v394
  %v1115 = vmul.f32 %v397, %v397
  %v1116 = vmul.f32 %v402, %v402
  %v1117 = vmul.f32 %v405, %v405
  %v1118 = vmul.f32 %v410, %v410
  %v1119 = vmul.f32 %v413, %v413
  %v1120 = vmul.f32 %v418, %v418
  %v1121 = vmul.f32 %v421, %v421
  %v1122 = vmul.f32 %v426, %v426
  %v1123 = vmul.f32 %v429, %v429
  %v1124 = vmul.f32 %v434, %v434
  %v1125 = vmul.f32 %v437, %v437
  %v1126 = vmul.f32 %v442, %v442
  %v1127 = vmul.f32 %v445, %v445
  %v1128 = vmul.f32 %v450, %v450
  %v1129 = vmul.f32 %v453, %v453
  %v1130 = vmul.f32 %v458, %v458
  %v1131 = vmul.f32 %v461, %v461
  %v1132 = vmul.f32 %v466, %v466
  %v1133 = vmul.f32 %v469, %v469
  %v1134 = vmul.f32 %v474, %v474
  %v1135 = vmul.f32 %v477, %v477
  %v1136 = vmul.f32 %v482, %v482
  %v1137 = vmul.f32 %v485, %v485
  %v1138 = vmul.f32 %v490, %v490
  %v1139 = vmul.f32 %v493, %v493
  %v1140 = vmul.f32 %v498, %v498
  %v1141 = vmul.f32 %v501, %v501
  %v1142 = vmul.f32 %v506, %v506
  %v1143 = vmul.f32 %v509, %v509
  %v1144 = vmul.f32 %v514, %v514
  %v1145 = vmul.f32 %v517, %v517
  %v1146 = vmul.f32 %v522, %v522
  %v1147 = vmul.f32 %v525, %v525
  %v1148 = vmul.f32 %v530, %v530
  %v1149 = vmul.f32 %v533, %v533
  %v1150 = vmul.f32 %v538, %v538
  %v1151 = vmul.f32 %v541, %v541
  %v1152 = vmul.f32 %v546, %v546
  %v1153 = vmul.f32 %v549, %v549
  %v1154 = vmul.f32 %v554, %v554
  %v1155 = vmul.f32 %v557, %v557
  %v1156 = vmul.f32 %v562, %v562
  %v1157 = vmul.f32 %v565, %v565
  %v1158 = vmul.f32 %v570, %v570
  %v1159 = vmul.f32 %v573, %v573
  %v1160 = vmul.f32 %v578, %v578
  %v1161 = vmul.f32 %v581, %v581
  %v1162 = vmul.f32 %v586, %v586
  %v1163 = vmul.f32 %v589, %v589
  %v1164 = vmul.f32 %v594, %v594
  %v1165 = vmul.f32 %v597, %v597
  %v1166 = vmul.f32 %v602, %v602
  %v1167 = vmul.f32 %v605, %v605
  %v1168 = vmul.f32 %v610, %v610
  %v1169 = vmul.f32 %v613, %v613
  %v1170 = vmul.f32 %v618, %v618
  %v1171 = vmul.f32 %v621, %v621
  %v1172 = vmul.f32 %v626, %v626
  %v1173 = vmul.f32 %v629, %v629
  %v1174 = vmul.f32 %v634, %v634
  %v1175 = vmul.f32 %v637, %v637
  %v1176 = vmul.f32 %v642, %v642
  %v1177 = vmul.f32 %v645, %v645
  %v1178 = vsel %vm976, %v1114, 0.0
  %v1179 = vsel %vm976, %v1115, 0.0
  %v1180 = vadd.f32 %v1178, %v1179
  %v1181 = vsel %vm976, %v1116, 0.0
  %v1182 = vadd.f32 %v1180, %v1181
  %v1183 = vsel %vm976, %v1117, 0.0
  %v1184 = vadd.f32 %v1182, %v1183
  %v1185 = vsel %vm976, %v1118, 0.0
  %v1186 = vadd.f32 %v1184, %v1185
  %v1187 = vsel %vm976, %v1119, 0.0
  %v1188 = vadd.f32 %v1186, %v1187
  %v1189 = vsel %vm976, %v1120, 0.0
  %v1190 = vadd.f32 %v1188, %v1189
  %v1191 = vsel %vm976, %v1121, 0.0
  %v1192 = vadd.f32 %v1190, %v1191
  %v1193 = vsel %vm976, %v1122, 0.0
  %v1194 = vadd.f32 %v1192, %v1193
  %v1195 = vsel %vm976, %v1123, 0.0
  %v1196 = vadd.f32 %v1194, %v1195
  %v1197 = vsel %vm976, %v1124, 0.0
  %v1198 = vadd.f32 %v1196, %v1197
  %v1199 = vsel %vm976, %v1125, 0.0
  %v1200 = vadd.f32 %v1198, %v1199
  %v1201 = vsel %vm976, %v1126, 0.0
  %v1202 = vadd.f32 %v1200, %v1201
  %v1203 = vsel %vm976, %v1127, 0.0
  %v1204 = vadd.f32 %v1202, %v1203
  %v1205 = vsel %vm976, %v1128, 0.0
  %v1206 = vadd.f32 %v1204, %v1205
  %v1207 = vsel %vm976, %v1129, 0.0
  %v1208 = vadd.f32 %v1206, %v1207
  %v1209 = vsel %vm976, %v1130, 0.0
  %v1210 = vadd.f32 %v1208, %v1209
  %v1211 = vsel %vm976, %v1131, 0.0
  %v1212 = vadd.f32 %v1210, %v1211
  %v1213 = vsel %vm976, %v1132, 0.0
  %v1214 = vadd.f32 %v1212, %v1213
  %v1215 = vsel %vm976, %v1133, 0.0
  %v1216 = vadd.f32 %v1214, %v1215
  %v1217 = vsel %vm976, %v1134, 0.0
  %v1218 = vadd.f32 %v1216, %v1217
  %v1219 = vsel %vm976, %v1135, 0.0
  %v1220 = vadd.f32 %v1218, %v1219
  %v1221 = vsel %vm976, %v1136, 0.0
  %v1222 = vadd.f32 %v1220, %v1221
  %v1223 = vsel %vm976, %v1137, 0.0
  %v1224 = vadd.f32 %v1222, %v1223
  %v1225 = vsel %vm976, %v1138, 0.0
  %v1226 = vadd.f32 %v1224, %v1225
  %v1227 = vsel %vm976, %v1139, 0.0
  %v1228 = vadd.f32 %v1226, %v1227
  %v1229 = vsel %vm976, %v1140, 0.0
  %v1230 = vadd.f32 %v1228, %v1229
  %v1231 = vsel %vm976, %v1141, 0.0
  %v1232 = vadd.f32 %v1230, %v1231
  %v1233 = vsel %vm976, %v1142, 0.0
  %v1234 = vadd.f32 %v1232, %v1233
  %v1235 = vsel %vm976, %v1143, 0.0
  %v1236 = vadd.f32 %v1234, %v1235
  %v1237 = vsel %vm976, %v1144, 0.0
  %v1238 = vadd.f32 %v1236, %v1237
  %v1239 = vsel %vm976, %v1145, 0.0
  %v1240 = vadd.f32 %v1238, %v1239
  %v1241 = vsel %vm976, %v1146, 0.0
  %v1242 = vadd.f32 %v1240, %v1241
  %v1243 = vsel %vm976, %v1147, 0.0
  %v1244 = vadd.f32 %v1242, %v1243
  %v1245 = vsel %vm976, %v1148, 0.0
  %v1246 = vadd.f32 %v1244, %v1245
  %v1247 = vsel %vm976, %v1149, 0.0
  %v1248 = vadd.f32 %v1246, %v1247
  %v1249 = vsel %vm976, %v1150, 0.0
  %v1250 = vadd.f32 %v1248, %v1249
  %v1251 = vsel %vm976, %v1151, 0.0
  %v1252 = vadd.f32 %v1250, %v1251
  %v1253 = vsel %vm976, %v1152, 0.0
  %v1254 = vadd.f32 %v1252, %v1253
  %v1255 = vsel %vm976, %v1153, 0.0
  %v1256 = vadd.f32 %v1254, %v1255
  %v1257 = vsel %vm976, %v1154, 0.0
  %v1258 = vadd.f32 %v1256, %v1257
  %v1259 = vsel %vm976, %v1155, 0.0
  %v1260 = vadd.f32 %v1258, %v1259
  %v1261 = vsel %vm976, %v1156, 0.0
  %v1262 = vadd.f32 %v1260, %v1261
  %v1263 = vsel %vm976, %v1157, 0.0
  %v1264 = vadd.f32 %v1262, %v1263
  %v1265 = vsel %vm976, %v1158, 0.0
  %v1266 = vadd.f32 %v1264, %v1265
  %v1267 = vsel %vm976, %v1159, 0.0
  %v1268 = vadd.f32 %v1266, %v1267
  %v1269 = vsel %vm976, %v1160, 0.0
  %v1270 = vadd.f32 %v1268, %v1269
  %v1271 = vsel %vm976, %v1161, 0.0
  %v1272 = vadd.f32 %v1270, %v1271
  %v1273 = vsel %vm976, %v1162, 0.0
  %v1274 = vadd.f32 %v1272, %v1273
  %v1275 = vsel %vm976, %v1163, 0.0
  %v1276 = vadd.f32 %v1274, %v1275
  %v1277 = vsel %vm976, %v1164, 0.0
  %v1278 = vadd.f32 %v1276, %v1277
  %v1279 = vsel %vm976, %v1165, 0.0
  %v1280 = vadd.f32 %v1278, %v1279
  %v1281 = vsel %vm976, %v1166, 0.0
  %v1282 = vadd.f32 %v1280, %v1281
  %v1283 = vsel %vm976, %v1167, 0.0
  %v1284 = vadd.f32 %v1282, %v1283
  %v1285 = vsel %vm976, %v1168, 0.0
  %v1286 = vadd.f32 %v1284, %v1285
  %v1287 = vsel %vm976, %v1169, 0.0
  %v1288 = vadd.f32 %v1286, %v1287
  %v1289 = vsel %vm976, %v1170, 0.0
  %v1290 = vadd.f32 %v1288, %v1289
  %v1291 = vsel %vm976, %v1171, 0.0
  %v1292 = vadd.f32 %v1290, %v1291
  %v1293 = vsel %vm976, %v1172, 0.0
  %v1294 = vadd.f32 %v1292, %v1293
  %v1295 = vsel %vm976, %v1173, 0.0
  %v1296 = vadd.f32 %v1294, %v1295
  %v1297 = vsel %vm976, %v1174, 0.0
  %v1298 = vadd.f32 %v1296, %v1297
  %v1299 = vsel %vm976, %v1175, 0.0
  %v1300 = vadd.f32 %v1298, %v1299
  %v1301 = vsel %vm976, %v1176, 0.0
  %v1302 = vadd.f32 %v1300, %v1301
  %v1303 = vsel %vm976, %v1177, 0.0
  %v1304 = vadd.f32 %v1302, %v1303
  %v1305 = vrot.slane %v1304, 4
  %v1306 = vadd.f32 %v1304, %v1305
  %v1307 = vrot.slane %v1306, 2
  %v1308 = vadd.f32 %v1306, %v1307
  %v1309 = vrot.slane %v1308, 1
  %v1310 = vadd.f32 %v1308, %v1309
  %v1311 = vadd.f32 %v1113, %v1310
  %1312 = vst.msk [vmem:[%s3 + $0x1] sm:$0x1] %vm1111, %v1311
  // Predicated region
  $region14: #{conv_block.2} parent=0 // pred_check
    _
  $region15: #{conv_block.2} parent=0 // pred_check_branch
    %1314 = sbr.rel (0) target = $region17
  $region16: #{conv_block.2} parent=0 // pred_region
    _
  $region17: #{conv_block.2} parent=0 // pred_fallthru
    _
  // Predicated region
  $region18: #{conv_block.2} parent=0 // pred_check
    _
  $region19: #{conv_block.2} parent=0 // pred_check_branch
    %1316 = sbr.rel (0) target = $region21
  $region20: #{conv_block.2} parent=0 // pred_region
    _
  $region21: #{conv_block.2} parent=0 // pred_fallthru
    _
  // Predicated region
  $region22: #{conv_block.2} parent=0 // pred_check
    _
  $region23: #{conv_block.2} parent=0 // pred_check_branch
    %1318 = sbr.rel (0) target = $region25
  $region24: #{conv_block.2} parent=0 // pred_region
    _
  $region25: #{conv_block.2} parent=0 // pred_fallthru
    _
  // Predicated region
  $region26: #{conv_block.2} parent=0 // pred_check
    _
  $region27: #{conv_block.2} parent=0 // pred_check_branch
    %1320 = sbr.rel (0) target = $region29
  $region28: #{conv_block.2} parent=0 // pred_region
    _
  $region29: #{conv_block.2} parent=0 // pred_fallthru
    _

</llo_original>
